<compile_context>
chip_gen: v7x
topology: tpu7x:2x2x1
jax: 0.10.0
libtpu: 0.0.40
codegen_flags: <defaults>
</compile_context>

<pallas_src>
import functools
import math

import jax
import jax.numpy as jnp
import numpy as np
from jax.experimental import pallas as pl
from jax.experimental.pallas import tpu as pltpu


# ----------------------------------------------------------------------------
# Kernel: one grid step == one batch element of the encoder block.
# ----------------------------------------------------------------------------
def _encoder_block_kernel(x_ref, bias_ref,
                          ln1_a_ref, ln1_b_ref,
                          wqkv_ref, bqkv_ref, wo_ref, bo_ref,
                          ln2_a_ref, ln2_b_ref,
                          w1_ref, b1_ref, w2_ref, b2_ref,
                          out_ref, *, heads, d_k, eps):
    x = x_ref[...]                        # (S, D)
    bias = bias_ref[...]                  # (S, S) additive mask: 0 / -1e9
    S, D = x.shape

    def layer_norm(z, a, b):
        # torch module: a * (z - mean) / (std + eps) + b, unbiased std (D-1)
        mean = jnp.mean(z, axis=-1, keepdims=True)
        centered = z - mean
        var = jnp.sum(centered * centered, axis=-1, keepdims=True) \
            * jnp.float32(1.0 / (D - 1))
        inv = pl.reciprocal(jnp.sqrt(var) + eps)           # EUP, frees the VALU
        return centered * (a * inv) + b

    # ---------------- sublayer 0: multi-head self-attention + residual ------
    xn = layer_norm(x, ln1_a_ref[...], ln1_b_ref[...])
    # fused QKV projection; the Q block of wqkv/bqkv is pre-scaled by 1/sqrt(d_k)
    qkv = (jnp.dot(xn, wqkv_ref[...], preferred_element_type=jnp.float32)
           + bqkv_ref[...])                                # (S, 3D)

    def heads_of(block):                                   # (S, D) -> (H, S, d_k)
        return jnp.transpose(block.reshape(S, heads, d_k), (1, 0, 2))

    qh = heads_of(qkv[:, 0 * D:1 * D])
    kh = heads_of(qkv[:, 1 * D:2 * D])
    vh = heads_of(qkv[:, 2 * D:3 * D])

    # one batched matmul for all heads' scores, one for all heads' contexts
    scores = jnp.einsum('hqd,hkd->hqk', qh, kh,
                        preferred_element_type=jnp.float32)        # (H, S, S)
    scores = scores + bias[None, :, :]
    m = jnp.max(scores, axis=-1, keepdims=True)
    e = jnp.exp(scores - m)
    attn = e * pl.reciprocal(jnp.sum(e, axis=-1, keepdims=True))   # exact softmax
    # dropout on attn: eval-mode identity

    ctx = jnp.einsum('hqk,hkd->hqd', attn, vh,
                     preferred_element_type=jnp.float32)           # (H, S, d_k)
    ctx = jnp.transpose(ctx, (1, 0, 2)).reshape(S, D)              # concat heads
    attn_out = (jnp.dot(ctx, wo_ref[...], preferred_element_type=jnp.float32)
                + bo_ref[...])
    x1 = x + attn_out                      # residual (dropout = identity)

    # ---------------- sublayer 1: position-wise feed-forward + residual -----
    x1n = layer_norm(x1, ln2_a_ref[...], ln2_b_ref[...])
    hid = jnp.maximum(
        jnp.dot(x1n, w1_ref[...], preferred_element_type=jnp.float32)
        + b1_ref[...], jnp.float32(0.0))                           # (S, d_ff) ReLU
    ffn = (jnp.dot(hid, w2_ref[...], preferred_element_type=jnp.float32)
           + b2_ref[...])                                          # (S, D)
    out_ref[...] = x1 + ffn                # residual (dropout = identity)


# ----------------------------------------------------------------------------
# One-time parameter packing (torch layout -> kernel layout).
# ----------------------------------------------------------------------------
def pack_params(raw, *, heads):
    (ln1_a, ln1_b, wq, bq, wk, bk, wv, bv, wo, bo,
     ln2_a, ln2_b, w1, b1, w2, b2) = raw
    D = wq.shape[1]
    d_k = D // heads
    scale = jnp.float32(1.0 / math.sqrt(d_k))
    # nn.Linear stores (out, in); kernel consumes (in, out).  Fold the
    # 1/sqrt(d_k) attention scale into the Q projection.
    w_qkv = jnp.concatenate([wq.T * scale, wk.T, wv.T], axis=1)      # (D, 3D)
    b_qkv = jnp.concatenate([bq * scale, bk, bv])[None, :]           # (1, 3D)
    return (ln1_a[None, :], ln1_b[None, :],
            w_qkv, b_qkv, wo.T, bo[None, :],
            ln2_a[None, :], ln2_b[None, :],
            w1.T, b1[None, :], w2.T, b2[None, :])


# ----------------------------------------------------------------------------
# Wrapper: grid over batch, per-batch activation tiles, resident weights.
# ----------------------------------------------------------------------------
@functools.partial(jax.jit, static_argnames=("heads",))
def encoder_block(x, mask, packed, *, heads):
    B, S, D = x.shape
    d_k = D // heads

    # Additive attention bias (0 where attended, -1e9 where masked), computed
    # once outside the kernel; replaces the per-head compare+select.
    bias = jnp.where(mask == 0, jnp.float32(-1e9), jnp.float32(0.0))  # (B,S,S)

    kernel = functools.partial(_encoder_block_kernel,
                               heads=heads, d_k=d_k, eps=1e-6)

    def resident(shape):
        # full-block spec; constant index_map keeps the block VMEM-resident
        zeros = (0,) * len(shape)
        return pl.BlockSpec(shape, lambda b: zeros)

    weight_specs = [resident(p.shape) for p in packed]

    out = pl.pallas_call(
        kernel,
        out_shape=jax.ShapeDtypeStruct((B, S, D), jnp.float32),
        grid=(B,),
        in_specs=[pl.BlockSpec((None, S, D), lambda b: (b, 0, 0)),
                  pl.BlockSpec((None, S, S), lambda b: (b, 0, 0)),
                  *weight_specs],
        out_specs=pl.BlockSpec((None, S, D), lambda b: (b, 0, 0)),
        compiler_params=pltpu.CompilerParams(
            dimension_semantics=("parallel",),
            vmem_limit_bytes=32 * 1024 * 1024),
    )(x, bias, *packed)
    return out


# ----------------------------------------------------------------------------
# Pure-JAX reference mirroring the PyTorch module (eval-mode dropout).
# ----------------------------------------------------------------------------
def _reference(x, mask, raw, *, heads, eps=1e-6):
    B, S, D = x.shape
    d_k = D // heads
    (ln1_a, ln1_b, wq, bq, wk, bk, wv, bv, wo, bo,
     ln2_a, ln2_b, w1, b1, w2, b2) = raw

    def layer_norm(z, a, b):
        mean = jnp.mean(z, axis=-1, keepdims=True)
        std = jnp.sqrt(jnp.sum((z - mean) ** 2, axis=-1, keepdims=True)
                       / (z.shape[-1] - 1))
        return a * (z - mean) / (std + eps) + b

    def lin(z, w, b):
        return z @ w.T + b

    def mha(q, k, v, m):
        def split(t):
            return jnp.transpose(t.reshape(B, S, heads, d_k), (0, 2, 1, 3))
        qh, kh, vh = split(lin(q, wq, bq)), split(lin(k, wk, bk)), split(lin(v, wv, bv))
        scores = jnp.einsum('bhqd,bhkd->bhqk', qh, kh) / math.sqrt(d_k)
        scores = jnp.where(m[:, None, :, :] == 0, -1e9, scores)
        attn = jax.nn.softmax(scores, axis=-1)
        ctx = jnp.einsum('bhqk,bhkd->bhqd', attn, vh)
        ctx = jnp.transpose(ctx, (0, 2, 1, 3)).reshape(B, S, D)
        return lin(ctx, wo, bo)

    xn = layer_norm(x, ln1_a, ln1_b)
    x1 = x + mha(xn, xn, xn, mask)                    # sublayer 0
    x1n = layer_norm(x1, ln2_a, ln2_b)
    ffn = lin(jax.nn.relu(lin(x1n, w1, b1)), w2, b2)  # sublayer 1
    return x1 + ffn


if __name__ == "__main__":
    B, S, D, H, DFF = 2, 8, 32, 4, 128   # batch, seq, d_model, heads, d_ff

    key = jax.random.PRNGKey(0)
    ks = jax.random.split(key, 17)

    def lin_init(kw, kb, fan_in, fan_out):
        bound = 1.0 / math.sqrt(fan_in)
        w = jax.random.uniform(kw, (fan_out, fan_in), jnp.float32, -bound, bound)
        b = jax.random.uniform(kb, (fan_out,), jnp.float32, -bound, bound)
        return w, b

    wq, bq = lin_init(ks[0], ks[1], D, D)
    wk, bk = lin_init(ks[2], ks[3], D, D)
    wv, bv = lin_init(ks[4], ks[5], D, D)
    wo, bo = lin_init(ks[6], ks[7], D, D)
    w1, b1 = lin_init(ks[8], ks[9], D, DFF)
    w2, b2 = lin_init(ks[10], ks[11], DFF, D)
    # randomized LayerNorm affine params so the test exercises them
    ln1_a = 1.0 + 0.1 * jax.random.normal(ks[12], (D,), jnp.float32)
    ln1_b = 0.1 * jax.random.normal(ks[13], (D,), jnp.float32)
    ln2_a = 1.0 + 0.1 * jax.random.normal(ks[14], (D,), jnp.float32)
    ln2_b = 0.1 * jax.random.normal(ks[15], (D,), jnp.float32)

    raw_params = (ln1_a, ln1_b, wq, bq, wk, bk, wv, bv, wo, bo,
                  ln2_a, ln2_b, w1, b1, w2, b2)

    x = jax.random.normal(ks[16], (B, S, D), jnp.float32)
    # causal mask (0 = masked out), shape (B, S, S) — same convention as torch
    mask = jnp.broadcast_to(
        jnp.tril(jnp.ones((S, S), jnp.int32))[None, :, :], (B, S, S))

    packed = pack_params(raw_params, heads=H)
    out = encoder_block(x, mask, packed, heads=H)
    out = jax.block_until_ready(out)

    ref = _reference(x, mask, raw_params, heads=H)
    np.testing.assert_allclose(np.asarray(out), np.asarray(ref),
                               rtol=1e-5, atol=1e-5)

    print("KERNEL_OK")
</pallas_src>

<mosaic_0001>
module attributes {stable_mosaic.version = 11 : i64} {
  func.func @_encoder_block_kernel(%arg0: i32, %arg1: memref<1x8x32xf32, #tpu.memory_space<vmem>>, %arg2: memref<1x8x8xf32, #tpu.memory_space<vmem>>, %arg3: memref<1x32xf32, #tpu.memory_space<vmem>>, %arg4: memref<1x32xf32, #tpu.memory_space<vmem>>, %arg5: memref<32x96xf32, #tpu.memory_space<vmem>>, %arg6: memref<1x96xf32, #tpu.memory_space<vmem>>, %arg7: memref<32x32xf32, #tpu.memory_space<vmem>>, %arg8: memref<1x32xf32, #tpu.memory_space<vmem>>, %arg9: memref<1x32xf32, #tpu.memory_space<vmem>>, %arg10: memref<1x32xf32, #tpu.memory_space<vmem>>, %arg11: memref<32x128xf32, #tpu.memory_space<vmem>>, %arg12: memref<1x128xf32, #tpu.memory_space<vmem>>, %arg13: memref<128x32xf32, #tpu.memory_space<vmem>>, %arg14: memref<1x32xf32, #tpu.memory_space<vmem>>, %arg15: memref<1x8x32xf32, #tpu.memory_space<vmem>>) attributes {dimension_semantics = [#tpu.dimension_semantics<parallel>], iteration_bounds = array<i64: 2>, scalar_prefetch = 0 : i64, scratch_operands = 0 : i64, tpu.core_type = #tpu.core_type<tc>, window_params = [{transform_indices = @transform_0, window_bounds = array<i64: 1, 8, 32>}, {transform_indices = @transform_1, window_bounds = array<i64: 1, 8, 8>}, {pipeline_mode = #tpu.pipeline_mode<synchronous>, transform_indices = @transform_2, window_bounds = array<i64: 1, 32>}, {pipeline_mode = #tpu.pipeline_mode<synchronous>, transform_indices = @transform_3, window_bounds = array<i64: 1, 32>}, {pipeline_mode = #tpu.pipeline_mode<synchronous>, transform_indices = @transform_4, window_bounds = array<i64: 32, 96>}, {pipeline_mode = #tpu.pipeline_mode<synchronous>, transform_indices = @transform_5, window_bounds = array<i64: 1, 96>}, {pipeline_mode = #tpu.pipeline_mode<synchronous>, transform_indices = @transform_6, window_bounds = array<i64: 32, 32>}, {pipeline_mode = #tpu.pipeline_mode<synchronous>, transform_indices = @transform_7, window_bounds = array<i64: 1, 32>}, {pipeline_mode = #tpu.pipeline_mode<synchronous>, transform_indices = @transform_8, window_bounds = array<i64: 1, 32>}, {pipeline_mode = #tpu.pipeline_mode<synchronous>, transform_indices = @transform_9, window_bounds = array<i64: 1, 32>}, {pipeline_mode = #tpu.pipeline_mode<synchronous>, transform_indices = @transform_10, window_bounds = array<i64: 32, 128>}, {pipeline_mode = #tpu.pipeline_mode<synchronous>, transform_indices = @transform_11, window_bounds = array<i64: 1, 128>}, {pipeline_mode = #tpu.pipeline_mode<synchronous>, transform_indices = @transform_12, window_bounds = array<i64: 128, 32>}, {pipeline_mode = #tpu.pipeline_mode<synchronous>, transform_indices = @transform_13, window_bounds = array<i64: 1, 32>}, {transform_indices = @transform_14, window_bounds = array<i64: 1, 8, 32>}]} {
    %c0 = arith.constant 0 : index
    %c0_0 = arith.constant 0 : index
    %c0_1 = arith.constant 0 : index
    %0 = vector.load %arg1[%c0, %c0_0, %c0_1] : memref<1x8x32xf32, #tpu.memory_space<vmem>>, vector<1x8x32xf32>
    %1 = vector.shape_cast %0 : vector<1x8x32xf32> to vector<8x32xf32>
    %c0_2 = arith.constant 0 : index
    %c0_3 = arith.constant 0 : index
    %c0_4 = arith.constant 0 : index
    %2 = vector.load %arg2[%c0_2, %c0_3, %c0_4] : memref<1x8x8xf32, #tpu.memory_space<vmem>>, vector<1x8x8xf32>
    %3 = vector.shape_cast %2 : vector<1x8x8xf32> to vector<8x8xf32>
    %c0_5 = arith.constant 0 : index
    %c0_6 = arith.constant 0 : index
    %4 = vector.load %arg3[%c0_5, %c0_6] : memref<1x32xf32, #tpu.memory_space<vmem>>, vector<1x32xf32>
    %c0_7 = arith.constant 0 : index
    %c0_8 = arith.constant 0 : index
    %5 = vector.load %arg4[%c0_7, %c0_8] : memref<1x32xf32, #tpu.memory_space<vmem>>, vector<1x32xf32>
    %cst = arith.constant dense<0.000000e+00> : vector<8xf32>
    %6 = vector.multi_reduction <add>, %1, %cst [1] : vector<8x32xf32> to vector<8xf32>
    %7 = vector.shape_cast %6 : vector<8xf32> to vector<8x1xf32>
    %cst_9 = arith.constant 3.200000e+01 : f32
    %8 = vector.broadcast %cst_9 : f32 to vector<8x1xf32>
    %9 = arith.divf %7, %8 : vector<8x1xf32>
    %10 = vector.broadcast %9 : vector<8x1xf32> to vector<8x32xf32>
    %11 = arith.subf %1, %10 : vector<8x32xf32>
    %12 = arith.mulf %11, %11 : vector<8x32xf32>
    %cst_10 = arith.constant dense<0.000000e+00> : vector<8xf32>
    %13 = vector.multi_reduction <add>, %12, %cst_10 [1] : vector<8x32xf32> to vector<8xf32>
    %14 = vector.shape_cast %13 : vector<8xf32> to vector<8x1xf32>
    %cst_11 = arith.constant 0.0322580636 : f32
    %15 = vector.broadcast %cst_11 : f32 to vector<8x1xf32>
    %16 = arith.mulf %14, %15 : vector<8x1xf32>
    %17 = math.sqrt %16 : vector<8x1xf32>
    %cst_12 = arith.constant 9.99999997E-7 : f32
    %18 = vector.broadcast %cst_12 : f32 to vector<8x1xf32>
    %19 = arith.addf %17, %18 : vector<8x1xf32>
    %20 = tpu.reciprocal %19 : vector<8x1xf32> -> vector<8x1xf32>
    %21 = vector.broadcast %4 : vector<1x32xf32> to vector<8x32xf32>
    %22 = vector.broadcast %20 : vector<8x1xf32> to vector<8x32xf32>
    %23 = arith.mulf %21, %22 : vector<8x32xf32>
    %24 = arith.mulf %11, %23 : vector<8x32xf32>
    %25 = vector.broadcast %5 : vector<1x32xf32> to vector<8x32xf32>
    %26 = arith.addf %24, %25 : vector<8x32xf32>
    %c0_13 = arith.constant 0 : index
    %c0_14 = arith.constant 0 : index
    %27 = vector.load %arg5[%c0_13, %c0_14] : memref<32x96xf32, #tpu.memory_space<vmem>>, vector<32x96xf32>
    %cst_15 = arith.constant dense<0.000000e+00> : vector<8x96xf32>
    %28 = tpu.matmul %26, %27, %cst_15 {dimension_numbers = #tpu.dot_dimension_numbers<[1], [0], [0], [1], [0, 0, 1, 1], [], []>} : vector<8x32xf32>, vector<32x96xf32>, vector<8x96xf32> -> vector<8x96xf32>
    %c0_16 = arith.constant 0 : index
    %c0_17 = arith.constant 0 : index
    %29 = vector.load %arg6[%c0_16, %c0_17] : memref<1x96xf32, #tpu.memory_space<vmem>>, vector<1x96xf32>
    %30 = vector.broadcast %29 : vector<1x96xf32> to vector<8x96xf32>
    %31 = arith.addf %28, %30 : vector<8x96xf32>
    %32 = vector.extract_strided_slice %31 {offsets = [0, 0], sizes = [8, 32], strides = [1, 1]} : vector<8x96xf32> to vector<8x32xf32>
    %33 = vector.shape_cast %32 : vector<8x32xf32> to vector<8x4x8xf32>
    %34 = tpu.transpose %33, [1, 0, 2] : vector<8x4x8xf32> -> vector<4x8x8xf32>
    %35 = vector.extract_strided_slice %31 {offsets = [0, 32], sizes = [8, 32], strides = [1, 1]} : vector<8x96xf32> to vector<8x32xf32>
    %36 = vector.shape_cast %35 : vector<8x32xf32> to vector<8x4x8xf32>
    %37 = tpu.transpose %36, [1, 0, 2] : vector<8x4x8xf32> -> vector<4x8x8xf32>
    %38 = vector.extract_strided_slice %31 {offsets = [0, 64], sizes = [8, 32], strides = [1, 1]} : vector<8x96xf32> to vector<8x32xf32>
    %39 = vector.shape_cast %38 : vector<8x32xf32> to vector<8x4x8xf32>
    %40 = tpu.transpose %39, [1, 0, 2] : vector<8x4x8xf32> -> vector<4x8x8xf32>
    "tpu.trace_start"() <{level = 10 : i32, message = "hqd,hkd->hqk"}> : () -> ()
    %cst_18 = arith.constant dense<0.000000e+00> : vector<4x8x8xf32>
    %41 = tpu.matmul %34, %37, %cst_18 {dimension_numbers = #tpu.dot_dimension_numbers<[2], [2], [1], [1], [0, 0, 0, 1, 1, 1], [0], [0]>} : vector<4x8x8xf32>, vector<4x8x8xf32>, vector<4x8x8xf32> -> vector<4x8x8xf32>
    "tpu.trace_stop"() : () -> ()
    %42 = vector.shape_cast %3 : vector<8x8xf32> to vector<1x8x8xf32>
    %43 = vector.broadcast %42 : vector<1x8x8xf32> to vector<4x8x8xf32>
    %44 = arith.addf %41, %43 : vector<4x8x8xf32>
    %cst_19 = arith.constant dense<0xFF800000> : vector<4x8xf32>
    %45 = vector.multi_reduction <maximumf>, %44, %cst_19 [2] : vector<4x8x8xf32> to vector<4x8xf32>
    %46 = vector.shape_cast %45 : vector<4x8xf32> to vector<4x8x1xf32>
    %47 = vector.broadcast %46 : vector<4x8x1xf32> to vector<4x8x8xf32>
    %48 = arith.subf %44, %47 : vector<4x8x8xf32>
    %49 = math.exp %48 : vector<4x8x8xf32>
    %cst_20 = arith.constant dense<0.000000e+00> : vector<4x8xf32>
    %50 = vector.multi_reduction <add>, %49, %cst_20 [2] : vector<4x8x8xf32> to vector<4x8xf32>
    %51 = vector.shape_cast %50 : vector<4x8xf32> to vector<4x8x1xf32>
    %52 = tpu.reciprocal %51 : vector<4x8x1xf32> -> vector<4x8x1xf32>
    %53 = vector.broadcast %52 : vector<4x8x1xf32> to vector<4x8x8xf32>
    %54 = arith.mulf %49, %53 : vector<4x8x8xf32>
    "tpu.trace_start"() <{level = 10 : i32, message = "hqk,hkd->hqd"}> : () -> ()
    %cst_21 = arith.constant dense<0.000000e+00> : vector<4x8x8xf32>
    %55 = tpu.matmul %54, %40, %cst_21 {dimension_numbers = #tpu.dot_dimension_numbers<[2], [1], [1], [2], [0, 0, 0, 1, 1, 2], [0], [0]>} : vector<4x8x8xf32>, vector<4x8x8xf32>, vector<4x8x8xf32> -> vector<4x8x8xf32>
    "tpu.trace_stop"() : () -> ()
    %56 = tpu.transpose %55, [1, 0, 2] : vector<4x8x8xf32> -> vector<8x4x8xf32>
    %57 = vector.shape_cast %56 : vector<8x4x8xf32> to vector<8x32xf32>
    %c0_22 = arith.constant 0 : index
    %c0_23 = arith.constant 0 : index
    %58 = vector.load %arg7[%c0_22, %c0_23] : memref<32x32xf32, #tpu.memory_space<vmem>>, vector<32x32xf32>
    %cst_24 = arith.constant dense<0.000000e+00> : vector<8x32xf32>
    %59 = tpu.matmul %57, %58, %cst_24 {dimension_numbers = #tpu.dot_dimension_numbers<[1], [0], [0], [1], [0, 0, 1, 1], [], []>} : vector<8x32xf32>, vector<32x32xf32>, vector<8x32xf32> -> vector<8x32xf32>
    %c0_25 = arith.constant 0 : index
    %c0_26 = arith.constant 0 : index
    %60 = vector.load %arg8[%c0_25, %c0_26] : memref<1x32xf32, #tpu.memory_space<vmem>>, vector<1x32xf32>
    %61 = vector.broadcast %60 : vector<1x32xf32> to vector<8x32xf32>
    %62 = arith.addf %59, %61 : vector<8x32xf32>
    %63 = arith.addf %1, %62 : vector<8x32xf32>
    %c0_27 = arith.constant 0 : index
    %c0_28 = arith.constant 0 : index
    %64 = vector.load %arg9[%c0_27, %c0_28] : memref<1x32xf32, #tpu.memory_space<vmem>>, vector<1x32xf32>
    %c0_29 = arith.constant 0 : index
    %c0_30 = arith.constant 0 : index
    %65 = vector.load %arg10[%c0_29, %c0_30] : memref<1x32xf32, #tpu.memory_space<vmem>>, vector<1x32xf32>
    %cst_31 = arith.constant dense<0.000000e+00> : vector<8xf32>
    %66 = vector.multi_reduction <add>, %63, %cst_31 [1] : vector<8x32xf32> to vector<8xf32>
    %67 = vector.shape_cast %66 : vector<8xf32> to vector<8x1xf32>
    %cst_32 = arith.constant 3.200000e+01 : f32
    %68 = vector.broadcast %cst_32 : f32 to vector<8x1xf32>
    %69 = arith.divf %67, %68 : vector<8x1xf32>
    %70 = vector.broadcast %69 : vector<8x1xf32> to vector<8x32xf32>
    %71 = arith.subf %63, %70 : vector<8x32xf32>
    %72 = arith.mulf %71, %71 : vector<8x32xf32>
    %cst_33 = arith.constant dense<0.000000e+00> : vector<8xf32>
    %73 = vector.multi_reduction <add>, %72, %cst_33 [1] : vector<8x32xf32> to vector<8xf32>
    %74 = vector.shape_cast %73 : vector<8xf32> to vector<8x1xf32>
    %cst_34 = arith.constant 0.0322580636 : f32
    %75 = vector.broadcast %cst_34 : f32 to vector<8x1xf32>
    %76 = arith.mulf %74, %75 : vector<8x1xf32>
    %77 = math.sqrt %76 : vector<8x1xf32>
    %cst_35 = arith.constant 9.99999997E-7 : f32
    %78 = vector.broadcast %cst_35 : f32 to vector<8x1xf32>
    %79 = arith.addf %77, %78 : vector<8x1xf32>
    %80 = tpu.reciprocal %79 : vector<8x1xf32> -> vector<8x1xf32>
    %81 = vector.broadcast %64 : vector<1x32xf32> to vector<8x32xf32>
    %82 = vector.broadcast %80 : vector<8x1xf32> to vector<8x32xf32>
    %83 = arith.mulf %81, %82 : vector<8x32xf32>
    %84 = arith.mulf %71, %83 : vector<8x32xf32>
    %85 = vector.broadcast %65 : vector<1x32xf32> to vector<8x32xf32>
    %86 = arith.addf %84, %85 : vector<8x32xf32>
    %c0_36 = arith.constant 0 : index
    %c0_37 = arith.constant 0 : index
    %87 = vector.load %arg11[%c0_36, %c0_37] : memref<32x128xf32, #tpu.memory_space<vmem>>, vector<32x128xf32>
    %cst_38 = arith.constant dense<0.000000e+00> : vector<8x128xf32>
    %88 = tpu.matmul %86, %87, %cst_38 {dimension_numbers = #tpu.dot_dimension_numbers<[1], [0], [0], [1], [0, 0, 1, 1], [], []>} : vector<8x32xf32>, vector<32x128xf32>, vector<8x128xf32> -> vector<8x128xf32>
    %c0_39 = arith.constant 0 : index
    %c0_40 = arith.constant 0 : index
    %89 = vector.load %arg12[%c0_39, %c0_40] : memref<1x128xf32, #tpu.memory_space<vmem>>, vector<1x128xf32>
    %90 = vector.broadcast %89 : vector<1x128xf32> to vector<8x128xf32>
    %91 = arith.addf %88, %90 : vector<8x128xf32>
    %cst_41 = arith.constant 0.000000e+00 : f32
    %92 = vector.broadcast %cst_41 : f32 to vector<8x128xf32>
    %93 = arith.maximumf %91, %92 : vector<8x128xf32>
    %c0_42 = arith.constant 0 : index
    %c0_43 = arith.constant 0 : index
    %94 = vector.load %arg13[%c0_42, %c0_43] : memref<128x32xf32, #tpu.memory_space<vmem>>, vector<128x32xf32>
    %cst_44 = arith.constant dense<0.000000e+00> : vector<8x32xf32>
    %95 = tpu.matmul %93, %94, %cst_44 {dimension_numbers = #tpu.dot_dimension_numbers<[1], [0], [0], [1], [0, 0, 1, 1], [], []>} : vector<8x128xf32>, vector<128x32xf32>, vector<8x32xf32> -> vector<8x32xf32>
    %c0_45 = arith.constant 0 : index
    %c0_46 = arith.constant 0 : index
    %96 = vector.load %arg14[%c0_45, %c0_46] : memref<1x32xf32, #tpu.memory_space<vmem>>, vector<1x32xf32>
    %97 = vector.broadcast %96 : vector<1x32xf32> to vector<8x32xf32>
    %98 = arith.addf %95, %97 : vector<8x32xf32>
    %99 = arith.addf %63, %98 : vector<8x32xf32>
    %c0_47 = arith.constant 0 : index
    %c0_48 = arith.constant 0 : index
    %c0_49 = arith.constant 0 : index
    %100 = vector.load %arg15[%c0_47, %c0_48, %c0_49] : memref<1x8x32xf32, #tpu.memory_space<vmem>>, vector<1x8x32xf32>
    %101 = vector.shape_cast %100 : vector<1x8x32xf32> to vector<8x32xf32>
    %102 = vector.shape_cast %99 : vector<8x32xf32> to vector<1x8x32xf32>
    tpu.vector_store %arg15[%c0_47, %c0_48, %c0_49], %102 {strides = array<i32>} : memref<1x8x32xf32, #tpu.memory_space<vmem>>, vector<1x8x32xf32>,
    return
  }
  func.func @transform_0(%arg0: i32) -> (i32, i32, i32) {
    %c0_i32 = arith.constant 0 : i32
    %c0_i32_0 = arith.constant 0 : i32
    %c0_i32_1 = arith.constant 0 : i32
    return %arg0, %c0_i32, %c0_i32_0 : i32, i32, i32
  }
  func.func @transform_1(%arg0: i32) -> (i32, i32, i32) {
    %c0_i32 = arith.constant 0 : i32
    %c0_i32_0 = arith.constant 0 : i32
    %c0_i32_1 = arith.constant 0 : i32
    return %arg0, %c0_i32, %c0_i32_0 : i32, i32, i32
  }
  func.func @transform_2(%arg0: i32) -> (i32, i32) {
    %c0_i32 = arith.constant 0 : i32
    %c0_i32_0 = arith.constant 0 : i32
    %c0_i32_1 = arith.constant 0 : i32
    return %c0_i32, %c0_i32_0 : i32, i32
  }
  func.func @transform_3(%arg0: i32) -> (i32, i32) {
    %c0_i32 = arith.constant 0 : i32
    %c0_i32_0 = arith.constant 0 : i32
    %c0_i32_1 = arith.constant 0 : i32
    return %c0_i32, %c0_i32_0 : i32, i32
  }
  func.func @transform_4(%arg0: i32) -> (i32, i32) {
    %c0_i32 = arith.constant 0 : i32
    %c0_i32_0 = arith.constant 0 : i32
    %c0_i32_1 = arith.constant 0 : i32
    return %c0_i32, %c0_i32_0 : i32, i32
  }
  func.func @transform_5(%arg0: i32) -> (i32, i32) {
    %c0_i32 = arith.constant 0 : i32
    %c0_i32_0 = arith.constant 0 : i32
    %c0_i32_1 = arith.constant 0 : i32
    return %c0_i32, %c0_i32_0 : i32, i32
  }
  func.func @transform_6(%arg0: i32) -> (i32, i32) {
    %c0_i32 = arith.constant 0 : i32
    %c0_i32_0 = arith.constant 0 : i32
    %c0_i32_1 = arith.constant 0 : i32
    return %c0_i32, %c0_i32_0 : i32, i32
  }
  func.func @transform_7(%arg0: i32) -> (i32, i32) {
    %c0_i32 = arith.constant 0 : i32
    %c0_i32_0 = arith.constant 0 : i32
    %c0_i32_1 = arith.constant 0 : i32
    return %c0_i32, %c0_i32_0 : i32, i32
  }
  func.func @transform_8(%arg0: i32) -> (i32, i32) {
    %c0_i32 = arith.constant 0 : i32
    %c0_i32_0 = arith.constant 0 : i32
    %c0_i32_1 = arith.constant 0 : i32
    return %c0_i32, %c0_i32_0 : i32, i32
  }
  func.func @transform_9(%arg0: i32) -> (i32, i32) {
    %c0_i32 = arith.constant 0 : i32
    %c0_i32_0 = arith.constant 0 : i32
    %c0_i32_1 = arith.constant 0 : i32
    return %c0_i32, %c0_i32_0 : i32, i32
  }
  func.func @transform_10(%arg0: i32) -> (i32, i32) {
    %c0_i32 = arith.constant 0 : i32
    %c0_i32_0 = arith.constant 0 : i32
    %c0_i32_1 = arith.constant 0 : i32
    return %c0_i32, %c0_i32_0 : i32, i32
  }
  func.func @transform_11(%arg0: i32) -> (i32, i32) {
    %c0_i32 = arith.constant 0 : i32
    %c0_i32_0 = arith.constant 0 : i32
    %c0_i32_1 = arith.constant 0 : i32
    return %c0_i32, %c0_i32_0 : i32, i32
  }
  func.func @transform_12(%arg0: i32) -> (i32, i32) {
    %c0_i32 = arith.constant 0 : i32
    %c0_i32_0 = arith.constant 0 : i32
    %c0_i32_1 = arith.constant 0 : i32
    return %c0_i32, %c0_i32_0 : i32, i32
  }
  func.func @transform_13(%arg0: i32) -> (i32, i32) {
    %c0_i32 = arith.constant 0 : i32
    %c0_i32_0 = arith.constant 0 : i32
    %c0_i32_1 = arith.constant 0 : i32
    return %c0_i32, %c0_i32_0 : i32, i32
  }
  func.func @transform_14(%arg0: i32) -> (i32, i32, i32) {
    %c0_i32 = arith.constant 0 : i32
    %c0_i32_0 = arith.constant 0 : i32
    %c0_i32_1 = arith.constant 0 : i32
    return %arg0, %c0_i32, %c0_i32_0 : i32, i32, i32
  }
}

</mosaic_0001>

<llo_original>
// kernel: encoder_block.1
$region0: #{encoder_block.1}
  #allocation0 [shape = 'u32[]', space=smem, size = 0x4, offset = 0x4, fixed_abs, tag = 'smem constant byte address 0x4 - core index']
  #allocation1 [shape = 'u32[144,128]{1,0:T(1,128)}', space=vmem, size = 0x12000, scoped, tag = 'internal scratch']
  %s0 = inlined_call_operand.vmem [shape: f32[2,8,32], index: 0, kind: input, shape index: {}]
  %s1 = inlined_call_operand.vmem [shape: f32[2,8,8], index: 1, kind: input, shape index: {}]
  %s2 = inlined_call_operand.vmem [shape: f32[1,32], index: 2, kind: input, shape index: {}]
  %s3 = inlined_call_operand.vmem [shape: f32[1,32], index: 3, kind: input, shape index: {}]
  %s4 = inlined_call_operand.vmem [shape: f32[32,96], index: 4, kind: input, shape index: {}]
  %s5 = inlined_call_operand.vmem [shape: f32[1,96], index: 5, kind: input, shape index: {}]
  %s6 = inlined_call_operand.vmem [shape: f32[32,32], index: 6, kind: input, shape index: {}]
  %s7 = inlined_call_operand.vmem [shape: f32[1,32], index: 7, kind: input, shape index: {}]
  %s8 = inlined_call_operand.vmem [shape: f32[1,32], index: 8, kind: input, shape index: {}]
  %s9 = inlined_call_operand.vmem [shape: f32[1,32], index: 9, kind: input, shape index: {}]
  %s10 = inlined_call_operand.vmem [shape: f32[32,128], index: 10, kind: input, shape index: {}]
  %s11 = inlined_call_operand.vmem [shape: f32[1,128], index: 11, kind: input, shape index: {}]
  %s12 = inlined_call_operand.vmem [shape: f32[128,32], index: 12, kind: input, shape index: {}]
  %s13 = inlined_call_operand.vmem [shape: f32[1,32], index: 13, kind: input, shape index: {}]
  %s14 = inlined_call_operand.hbm [shape: f32[2,8,32], index: 14, kind: output, shape index: {}]
  %s15 = sld [smem:[#allocation0]]
  $region89: #{encoder_block.1} parent=0
    _
  %s17 = ssub.s32 1, %s15
  %s18 = scalar_select 0, %s17, %s15
  $region1: #{encoder_block.1} parent=0
    #allocation2 [shape = 'u8[8192]{0}', space=vmem, size = 0x2000, scoped, tag = 'output window, operand 0']
    #allocation3 [shape = 's32[2]{0}', space=sflag, size = 0x8, scoped, tag = 'scoped memory for encoder_block.1']
    %19 = vsyncpa [#allocation3], 0
    %s20 = scalar_lea.sflag [#allocation3], 1
    %21 = vsyncpa %s20, 0
    loop: start=0, step=1, limit=4
    $region2: #{encoder_block.1} parent=1 // loop_pre_header
      _
    $region3: #{encoder_block.1} parent=1 // loop_header
      %s23 = sphi 0, %s27
      %p24 = scmp.ge.s32.totalorder %s23, 4
      %s33 = sphi 0, %s35
      %s36 = sphi 0, %s33
      %s37 = sphi 0, %s36
      %s53 = sphi 0, %s37
      %s59 = sphi 0, %s61
      %s62 = sphi 0, %s59
      %s63 = sphi 0, %s62
      %s79 = sphi 0, %s63
      %s83 = sphi 0, %s83
      %s85 = sphi 0, %s83
      %s86 = sphi 0, %s85
      %s100 = sphi 0, %s86
      %s104 = sphi 0, %s104
      %s106 = sphi 0, %s104
      %s107 = sphi 0, %s106
      %s121 = sphi 0, %s107
      %s125 = sphi 0, %s125
      %s127 = sphi 0, %s125
      %s128 = sphi 0, %s127
      %s142 = sphi 0, %s128
      %s146 = sphi 0, %s146
      %s148 = sphi 0, %s146
      %s149 = sphi 0, %s148
      %s163 = sphi 0, %s149
      %s167 = sphi 0, %s167
      %s169 = sphi 0, %s167
      %s170 = sphi 0, %s169
      %s184 = sphi 0, %s170
      %s188 = sphi 0, %s188
      %s190 = sphi 0, %s188
      %s191 = sphi 0, %s190
      %s205 = sphi 0, %s191
      %s209 = sphi 0, %s209
      %s211 = sphi 0, %s209
      %s212 = sphi 0, %s211
      %s226 = sphi 0, %s212
      %s230 = sphi 0, %s230
      %s232 = sphi 0, %s230
      %s233 = sphi 0, %s232
      %s247 = sphi 0, %s233
      %s251 = sphi 0, %s251
      %s253 = sphi 0, %s251
      %s254 = sphi 0, %s253
      %s268 = sphi 0, %s254
      %s272 = sphi 0, %s272
      %s274 = sphi 0, %s272
      %s275 = sphi 0, %s274
      %s289 = sphi 0, %s275
      %s293 = sphi 0, %s293
      %s295 = sphi 0, %s293
      %s296 = sphi 0, %s295
      %s310 = sphi 0, %s296
      %s314 = sphi 0, %s314
      %s316 = sphi 0, %s314
      %s317 = sphi 0, %s316
      %s331 = sphi 0, %s317
      %s337 = sphi 0, %s339
      %s340 = sphi 0, %s337
      %s341 = sphi 0, %s340
      %s357 = sphi 0, %s341
    $region4: #{encoder_block.1} parent=1 // loop_header_branch
      %26 = sbr.rel (%p24) target = $region8
    $region5: #{encoder_block.1} parent=1 // loop_body
      %s28 = ssub.s32 %s23, 1
      %s29 = ssub.s32 %s23, 2
      %s30 = sadd.s32 %s23, 1
      %s31 = ssub.s32 %s23, %s30
      %p32 = scmp.eq.s32.totalorder %s31, 0
      %s34 = sadd.s32 %s33, 1
      %s35 = scalar_select %p32, %s33, %s34
      %p38 = pneg %p32
      %p39 = scmp.eq.s32.totalorder %s23, 1
      %p40 = por %p38, %p39
      %p41 = scmp.ne.s32.totalorder %s33, %s36
      %p42 = scmp.eq.s32.totalorder %s23, 0
      %p43 = por %p41, %p42
      %p44 = scmp.ne.s32.totalorder %s33, %s36
      %p45 = scmp.eq.s32.totalorder %s28, 1
      %p46 = por %p44, %p45
      %p47 = scmp.ne.s32.totalorder %s36, %s37
      %p48 = scmp.eq.s32.totalorder %s28, 0
      %p49 = por %p47, %p48
      %p50 = scmp.ne.s32.totalorder %s36, %s37
      %p51 = scmp.eq.s32.totalorder %s29, 1
      %p52 = por %p50, %p51
      %p54 = scmp.ne.s32.totalorder %s37, %s53
      %p55 = scmp.eq.s32.totalorder %s29, 0
      %p56 = por %p54, %p55
      %s57 = ssub.s32 %s23, %s30
      %p58 = scmp.eq.s32.totalorder %s57, 0
      %s60 = sadd.s32 %s59, 1
      %s61 = scalar_select %p58, %s59, %s60
      %p64 = pneg %p58
      %p65 = scmp.eq.s32.totalorder %s23, 1
      %p66 = por %p64, %p65
      %p67 = scmp.ne.s32.totalorder %s59, %s62
      %p68 = scmp.eq.s32.totalorder %s23, 0
      %p69 = por %p67, %p68
      %p70 = scmp.ne.s32.totalorder %s59, %s62
      %p71 = scmp.eq.s32.totalorder %s28, 1
      %p72 = por %p70, %p71
      %p73 = scmp.ne.s32.totalorder %s62, %s63
      %p74 = scmp.eq.s32.totalorder %s28, 0
      %p75 = por %p73, %p74
      %p76 = scmp.ne.s32.totalorder %s62, %s63
      %p77 = scmp.eq.s32.totalorder %s29, 1
      %p78 = por %p76, %p77
      %p80 = scmp.ne.s32.totalorder %s63, %s79
      %p81 = scmp.eq.s32.totalorder %s29, 0
      %p82 = por %p80, %p81
      %s84 = sadd.s32 %s83, 1
      %p87 = scmp.eq.s32.totalorder %s23, 1
      %p88 = scmp.ne.s32.totalorder %s83, %s85
      %p89 = scmp.eq.s32.totalorder %s23, 0
      %p90 = por %p88, %p89
      %p91 = scmp.ne.s32.totalorder %s83, %s85
      %p92 = scmp.eq.s32.totalorder %s28, 1
      %p93 = por %p91, %p92
      %p94 = scmp.ne.s32.totalorder %s85, %s86
      %p95 = scmp.eq.s32.totalorder %s28, 0
      %p96 = por %p94, %p95
      %p97 = scmp.ne.s32.totalorder %s85, %s86
      %p98 = scmp.eq.s32.totalorder %s29, 1
      %p99 = por %p97, %p98
      %p101 = scmp.ne.s32.totalorder %s86, %s100
      %p102 = scmp.eq.s32.totalorder %s29, 0
      %p103 = por %p101, %p102
      %s105 = sadd.s32 %s104, 1
      %p108 = scmp.eq.s32.totalorder %s23, 1
      %p109 = scmp.ne.s32.totalorder %s104, %s106
      %p110 = scmp.eq.s32.totalorder %s23, 0
      %p111 = por %p109, %p110
      %p112 = scmp.ne.s32.totalorder %s104, %s106
      %p113 = scmp.eq.s32.totalorder %s28, 1
      %p114 = por %p112, %p113
      %p115 = scmp.ne.s32.totalorder %s106, %s107
      %p116 = scmp.eq.s32.totalorder %s28, 0
      %p117 = por %p115, %p116
      %p118 = scmp.ne.s32.totalorder %s106, %s107
      %p119 = scmp.eq.s32.totalorder %s29, 1
      %p120 = por %p118, %p119
      %p122 = scmp.ne.s32.totalorder %s107, %s121
      %p123 = scmp.eq.s32.totalorder %s29, 0
      %p124 = por %p122, %p123
      %s126 = sadd.s32 %s125, 1
      %p129 = scmp.eq.s32.totalorder %s23, 1
      %p130 = scmp.ne.s32.totalorder %s125, %s127
      %p131 = scmp.eq.s32.totalorder %s23, 0
      %p132 = por %p130, %p131
      %p133 = scmp.ne.s32.totalorder %s125, %s127
      %p134 = scmp.eq.s32.totalorder %s28, 1
      %p135 = por %p133, %p134
      %p136 = scmp.ne.s32.totalorder %s127, %s128
      %p137 = scmp.eq.s32.totalorder %s28, 0
      %p138 = por %p136, %p137
      %p139 = scmp.ne.s32.totalorder %s127, %s128
      %p140 = scmp.eq.s32.totalorder %s29, 1
      %p141 = por %p139, %p140
      %p143 = scmp.ne.s32.totalorder %s128, %s142
      %p144 = scmp.eq.s32.totalorder %s29, 0
      %p145 = por %p143, %p144
      %s147 = sadd.s32 %s146, 1
      %p150 = scmp.eq.s32.totalorder %s23, 1
      %p151 = scmp.ne.s32.totalorder %s146, %s148
      %p152 = scmp.eq.s32.totalorder %s23, 0
      %p153 = por %p151, %p152
      %p154 = scmp.ne.s32.totalorder %s146, %s148
      %p155 = scmp.eq.s32.totalorder %s28, 1
      %p156 = por %p154, %p155
      %p157 = scmp.ne.s32.totalorder %s148, %s149
      %p158 = scmp.eq.s32.totalorder %s28, 0
      %p159 = por %p157, %p158
      %p160 = scmp.ne.s32.totalorder %s148, %s149
      %p161 = scmp.eq.s32.totalorder %s29, 1
      %p162 = por %p160, %p161
      %p164 = scmp.ne.s32.totalorder %s149, %s163
      %p165 = scmp.eq.s32.totalorder %s29, 0
      %p166 = por %p164, %p165
      %s168 = sadd.s32 %s167, 1
      %p171 = scmp.eq.s32.totalorder %s23, 1
      %p172 = scmp.ne.s32.totalorder %s167, %s169
      %p173 = scmp.eq.s32.totalorder %s23, 0
      %p174 = por %p172, %p173
      %p175 = scmp.ne.s32.totalorder %s167, %s169
      %p176 = scmp.eq.s32.totalorder %s28, 1
      %p177 = por %p175, %p176
      %p178 = scmp.ne.s32.totalorder %s169, %s170
      %p179 = scmp.eq.s32.totalorder %s28, 0
      %p180 = por %p178, %p179
      %p181 = scmp.ne.s32.totalorder %s169, %s170
      %p182 = scmp.eq.s32.totalorder %s29, 1
      %p183 = por %p181, %p182
      %p185 = scmp.ne.s32.totalorder %s170, %s184
      %p186 = scmp.eq.s32.totalorder %s29, 0
      %p187 = por %p185, %p186
      %s189 = sadd.s32 %s188, 1
      %p192 = scmp.eq.s32.totalorder %s23, 1
      %p193 = scmp.ne.s32.totalorder %s188, %s190
      %p194 = scmp.eq.s32.totalorder %s23, 0
      %p195 = por %p193, %p194
      %p196 = scmp.ne.s32.totalorder %s188, %s190
      %p197 = scmp.eq.s32.totalorder %s28, 1
      %p198 = por %p196, %p197
      %p199 = scmp.ne.s32.totalorder %s190, %s191
      %p200 = scmp.eq.s32.totalorder %s28, 0
      %p201 = por %p199, %p200
      %p202 = scmp.ne.s32.totalorder %s190, %s191
      %p203 = scmp.eq.s32.totalorder %s29, 1
      %p204 = por %p202, %p203
      %p206 = scmp.ne.s32.totalorder %s191, %s205
      %p207 = scmp.eq.s32.totalorder %s29, 0
      %p208 = por %p206, %p207
      %s210 = sadd.s32 %s209, 1
      %p213 = scmp.eq.s32.totalorder %s23, 1
      %p214 = scmp.ne.s32.totalorder %s209, %s211
      %p215 = scmp.eq.s32.totalorder %s23, 0
      %p216 = por %p214, %p215
      %p217 = scmp.ne.s32.totalorder %s209, %s211
      %p218 = scmp.eq.s32.totalorder %s28, 1
      %p219 = por %p217, %p218
      %p220 = scmp.ne.s32.totalorder %s211, %s212
      %p221 = scmp.eq.s32.totalorder %s28, 0
      %p222 = por %p220, %p221
      %p223 = scmp.ne.s32.totalorder %s211, %s212
      %p224 = scmp.eq.s32.totalorder %s29, 1
      %p225 = por %p223, %p224
      %p227 = scmp.ne.s32.totalorder %s212, %s226
      %p228 = scmp.eq.s32.totalorder %s29, 0
      %p229 = por %p227, %p228
      %s231 = sadd.s32 %s230, 1
      %p234 = scmp.eq.s32.totalorder %s23, 1
      %p235 = scmp.ne.s32.totalorder %s230, %s232
      %p236 = scmp.eq.s32.totalorder %s23, 0
      %p237 = por %p235, %p236
      %p238 = scmp.ne.s32.totalorder %s230, %s232
      %p239 = scmp.eq.s32.totalorder %s28, 1
      %p240 = por %p238, %p239
      %p241 = scmp.ne.s32.totalorder %s232, %s233
      %p242 = scmp.eq.s32.totalorder %s28, 0
      %p243 = por %p241, %p242
      %p244 = scmp.ne.s32.totalorder %s232, %s233
      %p245 = scmp.eq.s32.totalorder %s29, 1
      %p246 = por %p244, %p245
      %p248 = scmp.ne.s32.totalorder %s233, %s247
      %p249 = scmp.eq.s32.totalorder %s29, 0
      %p250 = por %p248, %p249
      %s252 = sadd.s32 %s251, 1
      %p255 = scmp.eq.s32.totalorder %s23, 1
      %p256 = scmp.ne.s32.totalorder %s251, %s253
      %p257 = scmp.eq.s32.totalorder %s23, 0
      %p258 = por %p256, %p257
      %p259 = scmp.ne.s32.totalorder %s251, %s253
      %p260 = scmp.eq.s32.totalorder %s28, 1
      %p261 = por %p259, %p260
      %p262 = scmp.ne.s32.totalorder %s253, %s254
      %p263 = scmp.eq.s32.totalorder %s28, 0
      %p264 = por %p262, %p263
      %p265 = scmp.ne.s32.totalorder %s253, %s254
      %p266 = scmp.eq.s32.totalorder %s29, 1
      %p267 = por %p265, %p266
      %p269 = scmp.ne.s32.totalorder %s254, %s268
      %p270 = scmp.eq.s32.totalorder %s29, 0
      %p271 = por %p269, %p270
      %s273 = sadd.s32 %s272, 1
      %p276 = scmp.eq.s32.totalorder %s23, 1
      %p277 = scmp.ne.s32.totalorder %s272, %s274
      %p278 = scmp.eq.s32.totalorder %s23, 0
      %p279 = por %p277, %p278
      %p280 = scmp.ne.s32.totalorder %s272, %s274
      %p281 = scmp.eq.s32.totalorder %s28, 1
      %p282 = por %p280, %p281
      %p283 = scmp.ne.s32.totalorder %s274, %s275
      %p284 = scmp.eq.s32.totalorder %s28, 0
      %p285 = por %p283, %p284
      %p286 = scmp.ne.s32.totalorder %s274, %s275
      %p287 = scmp.eq.s32.totalorder %s29, 1
      %p288 = por %p286, %p287
      %p290 = scmp.ne.s32.totalorder %s275, %s289
      %p291 = scmp.eq.s32.totalorder %s29, 0
      %p292 = por %p290, %p291
      %s294 = sadd.s32 %s293, 1
      %p297 = scmp.eq.s32.totalorder %s23, 1
      %p298 = scmp.ne.s32.totalorder %s293, %s295
      %p299 = scmp.eq.s32.totalorder %s23, 0
      %p300 = por %p298, %p299
      %p301 = scmp.ne.s32.totalorder %s293, %s295
      %p302 = scmp.eq.s32.totalorder %s28, 1
      %p303 = por %p301, %p302
      %p304 = scmp.ne.s32.totalorder %s295, %s296
      %p305 = scmp.eq.s32.totalorder %s28, 0
      %p306 = por %p304, %p305
      %p307 = scmp.ne.s32.totalorder %s295, %s296
      %p308 = scmp.eq.s32.totalorder %s29, 1
      %p309 = por %p307, %p308
      %p311 = scmp.ne.s32.totalorder %s296, %s310
      %p312 = scmp.eq.s32.totalorder %s29, 0
      %p313 = por %p311, %p312
      %s315 = sadd.s32 %s314, 1
      %p318 = scmp.eq.s32.totalorder %s23, 1
      %p319 = scmp.ne.s32.totalorder %s314, %s316
      %p320 = scmp.eq.s32.totalorder %s23, 0
      %p321 = por %p319, %p320
      %p322 = scmp.ne.s32.totalorder %s314, %s316
      %p323 = scmp.eq.s32.totalorder %s28, 1
      %p324 = por %p322, %p323
      %p325 = scmp.ne.s32.totalorder %s316, %s317
      %p326 = scmp.eq.s32.totalorder %s28, 0
      %p327 = por %p325, %p326
      %p328 = scmp.ne.s32.totalorder %s316, %s317
      %p329 = scmp.eq.s32.totalorder %s29, 1
      %p330 = por %p328, %p329
      %p332 = scmp.ne.s32.totalorder %s317, %s331
      %p333 = scmp.eq.s32.totalorder %s29, 0
      %p334 = por %p332, %p333
      %s335 = ssub.s32 %s23, %s30
      %p336 = scmp.eq.s32.totalorder %s335, 0
      %s338 = sadd.s32 %s337, 1
      %s339 = scalar_select %p336, %s337, %s338
      %p342 = pneg %p336
      %p343 = scmp.eq.s32.totalorder %s23, 1
      %p344 = por %p342, %p343
      %p345 = scmp.ne.s32.totalorder %s337, %s340
      %p346 = scmp.eq.s32.totalorder %s23, 0
      %p347 = por %p345, %p346
      %p348 = scmp.ne.s32.totalorder %s337, %s340
      %p349 = scmp.eq.s32.totalorder %s28, 1
      %p350 = por %p348, %p349
      %p351 = scmp.ne.s32.totalorder %s340, %s341
      %p352 = scmp.eq.s32.totalorder %s28, 0
      %p353 = por %p351, %p352
      %p354 = scmp.ne.s32.totalorder %s340, %s341
      %p355 = scmp.eq.s32.totalorder %s29, 1
      %p356 = por %p354, %p355
      %p358 = scmp.ne.s32.totalorder %s341, %s357
      %p359 = scmp.eq.s32.totalorder %s29, 0
      %p360 = por %p358, %p359
      %p361 = scmp.le.s32.totalorder 1, %s23
      %p362 = scmp.lt.s32.totalorder %s23, 3
      %p363 = pnand %p361, %p362
      %p364 = pneg %p363
      // Predicated region
      $region9: #{encoder_block.1} parent=5 // pred_check
        _
      $region10: #{encoder_block.1} parent=5 // pred_check_branch
        %366 = sbr.rel (%p363) target = $region12
      $region11: #{encoder_block.1} parent=5 // pred_region
        %s367 = ssub.s32 %s23, 1
        // Predicated region
        $region13: #{encoder_block.1} parent=11 // pred_check
          %p368 = pneg %p96
        $region14: #{encoder_block.1} parent=11 // pred_check_branch
          %370 = sbr.rel (%p368) target = $region16
        $region15: #{encoder_block.1} parent=11 // pred_region
          _
        $region16: #{encoder_block.1} parent=11 // pred_fallthru
          _
        // Predicated region
        $region17: #{encoder_block.1} parent=11 // pred_check
          %p371 = pneg %p117
        $region18: #{encoder_block.1} parent=11 // pred_check_branch
          %373 = sbr.rel (%p371) target = $region20
        $region19: #{encoder_block.1} parent=11 // pred_region
          _
        $region20: #{encoder_block.1} parent=11 // pred_fallthru
          _
        // Predicated region
        $region21: #{encoder_block.1} parent=11 // pred_check
          %p374 = pneg %p138
        $region22: #{encoder_block.1} parent=11 // pred_check_branch
          %376 = sbr.rel (%p374) target = $region24
        $region23: #{encoder_block.1} parent=11 // pred_region
          _
        $region24: #{encoder_block.1} parent=11 // pred_fallthru
          _
        // Predicated region
        $region25: #{encoder_block.1} parent=11 // pred_check
          %p377 = pneg %p159
        $region26: #{encoder_block.1} parent=11 // pred_check_branch
          %379 = sbr.rel (%p377) target = $region28
        $region27: #{encoder_block.1} parent=11 // pred_region
          _
        $region28: #{encoder_block.1} parent=11 // pred_fallthru
          _
        // Predicated region
        $region29: #{encoder_block.1} parent=11 // pred_check
          %p380 = pneg %p180
        $region30: #{encoder_block.1} parent=11 // pred_check_branch
          %382 = sbr.rel (%p380) target = $region32
        $region31: #{encoder_block.1} parent=11 // pred_region
          _
        $region32: #{encoder_block.1} parent=11 // pred_fallthru
          _
        // Predicated region
        $region33: #{encoder_block.1} parent=11 // pred_check
          %p383 = pneg %p201
        $region34: #{encoder_block.1} parent=11 // pred_check_branch
          %385 = sbr.rel (%p383) target = $region36
        $region35: #{encoder_block.1} parent=11 // pred_region
          _
        $region36: #{encoder_block.1} parent=11 // pred_fallthru
          _
        // Predicated region
        $region37: #{encoder_block.1} parent=11 // pred_check
          %p386 = pneg %p222
        $region38: #{encoder_block.1} parent=11 // pred_check_branch
          %388 = sbr.rel (%p386) target = $region40
        $region39: #{encoder_block.1} parent=11 // pred_region
          _
        $region40: #{encoder_block.1} parent=11 // pred_fallthru
          _
        // Predicated region
        $region41: #{encoder_block.1} parent=11 // pred_check
          %p389 = pneg %p243
        $region42: #{encoder_block.1} parent=11 // pred_check_branch
          %391 = sbr.rel (%p389) target = $region44
        $region43: #{encoder_block.1} parent=11 // pred_region
          _
        $region44: #{encoder_block.1} parent=11 // pred_fallthru
          _
        // Predicated region
        $region45: #{encoder_block.1} parent=11 // pred_check
          %p392 = pneg %p264
        $region46: #{encoder_block.1} parent=11 // pred_check_branch
          %394 = sbr.rel (%p392) target = $region48
        $region47: #{encoder_block.1} parent=11 // pred_region
          _
        $region48: #{encoder_block.1} parent=11 // pred_fallthru
          _
        // Predicated region
        $region49: #{encoder_block.1} parent=11 // pred_check
          %p395 = pneg %p285
        $region50: #{encoder_block.1} parent=11 // pred_check_branch
          %397 = sbr.rel (%p395) target = $region52
        $region51: #{encoder_block.1} parent=11 // pred_region
          _
        $region52: #{encoder_block.1} parent=11 // pred_fallthru
          _
        // Predicated region
        $region53: #{encoder_block.1} parent=11 // pred_check
          %p398 = pneg %p306
        $region54: #{encoder_block.1} parent=11 // pred_check_branch
          %400 = sbr.rel (%p398) target = $region56
        $region55: #{encoder_block.1} parent=11 // pred_region
          _
        $region56: #{encoder_block.1} parent=11 // pred_fallthru
          _
        // Predicated region
        $region57: #{encoder_block.1} parent=11 // pred_check
          %p401 = pneg %p327
        $region58: #{encoder_block.1} parent=11 // pred_check_branch
          %403 = sbr.rel (%p401) target = $region60
        $region59: #{encoder_block.1} parent=11 // pred_region
          _
        $region60: #{encoder_block.1} parent=11 // pred_fallthru
          _
      $region12: #{encoder_block.1} parent=5 // pred_fallthru
        _
      %p404 = scmp.lt.s32.totalorder %s23, 2
      // Predicated region
      $region61: #{encoder_block.1} parent=5 // pred_check
        %p405 = pneg %p404
      $region62: #{encoder_block.1} parent=5 // pred_check_branch
        %407 = sbr.rel (%p405) target = $region64
      $region63: #{encoder_block.1} parent=5 // pred_region
        // Predicated region
        $region65: #{encoder_block.1} parent=63 // pred_check
          %p408 = pneg %p43
        $region66: #{encoder_block.1} parent=63 // pred_check_branch
          %410 = sbr.rel (%p408) target = $region68
        $region67: #{encoder_block.1} parent=63 // pred_region
          %p411 = scmp.lt.s32.totalorder %s23, 1
          %s412 = scalar_select %p411, %s23, 1
          %s413 = smul.addr %s412, 8
          %s414 = scalar_lea.vmem %s0, %s413
        $region68: #{encoder_block.1} parent=63 // pred_fallthru
          _
        // Predicated region
        $region69: #{encoder_block.1} parent=63 // pred_check
          %p415 = pneg %p69
        $region70: #{encoder_block.1} parent=63 // pred_check_branch
          %417 = sbr.rel (%p415) target = $region72
        $region71: #{encoder_block.1} parent=63 // pred_region
          %p418 = scmp.lt.s32.totalorder %s23, 1
          %s419 = scalar_select %p418, %s23, 1
          %s420 = smul.addr %s419, 8
          %s421 = scalar_lea.vmem %s1, %s420
        $region72: #{encoder_block.1} parent=63 // pred_fallthru
          _
      $region64: #{encoder_block.1} parent=5 // pred_fallthru
        _
      %p422 = scmp.le.s32.totalorder 1, %s23
      %p423 = scmp.lt.s32.totalorder %s23, 3
      %p424 = pnand %p422, %p423
      %p425 = pneg %p424
      // Predicated region
      $region73: #{encoder_block.1} parent=5 // pred_check
        _
      $region74: #{encoder_block.1} parent=5 // pred_check_branch
        %427 = sbr.rel (%p424) target = $region76
      $region75: #{encoder_block.1} parent=5 // pred_region
        %s428 = ssub.s32 %s23, 1
        %p429 = scmp.lt.s32.totalorder %s28, 1
        %s430 = scalar_select %p429, %s28, 1
        %s431 = smul.addr %s430, 8
        %s432 = scalar_lea.vmem %s0, %s431
        %p433 = pneg %p49
        %p434 = pneg %p46
        %p435 = scmp.lt.s32.totalorder %s28, 1
        %s436 = scalar_select %p435, %s28, 1
        %s437 = smul.addr %s436, 8
        %s438 = scalar_lea.vmem %s1, %s437
        %p439 = pneg %p75
        %p440 = pneg %p72
        %p441 = pneg %p96
        %p442 = pneg %p93
        %p443 = pneg %p117
        %p444 = pneg %p114
        %p445 = pneg %p138
        %p446 = pneg %p135
        %p447 = pneg %p159
        %p448 = pneg %p156
        %p449 = pneg %p180
        %p450 = pneg %p177
        %p451 = pneg %p201
        %p452 = pneg %p198
        %p453 = pneg %p222
        %p454 = pneg %p219
        %p455 = pneg %p243
        %p456 = pneg %p240
        %p457 = pneg %p264
        %p458 = pneg %p261
        %p459 = pneg %p285
        %p460 = pneg %p282
        %p461 = pneg %p306
        %p462 = pneg %p303
        %p463 = pneg %p327
        %p464 = pneg %p324
        %p465 = pneg %p353
        %p466 = pneg %p350
        %s467 = sand.u32 %s340, 1
        %s468 = scalar_lea.sflag [#allocation3], %s467
        %s469 = sand.u32 %s340, 1
        %s470 = smul.addr %s469, 8
        %s471 = scalar_lea.vmem [#allocation2], %s470
        %p472 = scmp.lt.s32.totalorder %s28, 1
        %s473 = scalar_select %p472, %s28, 1
        %s474 = smul.addr %s473, 8
        %s475 = scalar_lea.vmem %s0, %s474
        %p476 = scmp.lt.s32.totalorder %s28, 1
        %s477 = scalar_select %p476, %s28, 1
        %s478 = smul.addr %s477, 8
        %s479 = scalar_lea.vmem %s1, %s478
        %v480 = vld [vmem:[%s475] sm:$0xff]
        %v481 = vld [vmem:[%s479] sm:$0xff]
        %v482 = vld [vmem:[%s2] sm:$0x1]
        %v483 = vld [vmem:[%s3] sm:$0x1]
        %vm484 = vcmask 261120
        %v485 = vsel %vm484, %v480, 0.0
        %486 = vadd.xlane.f32.xlu0 %v485
        %v487 = vpop.xlane.xlu0 %486
        %v488 = vrcp.pop 32.0
        %v489 = vmul.f32 %v487, %v488
        %v490 = vsub.f32 %v480, %v489
        %v491 = vmul.f32 %v490, %v490
        %v492 = vsel %vm484, %v491, 0.0
        %493 = vadd.xlane.f32.xlu0 %v492
        %v494 = vpop.xlane.xlu0 %493
        %v495 = vmul.f32 %v494, 0.032258064
        %v496 = vrsqrt.pop %v495
        %v497 = vmul.f32 %v495, %v496
        %vm498 = vcmp.eq.f32.partialorder %v495, inf
        %v499 = vsel %vm498, %v495, %v497
        %vm500 = vcmp.eq.f32.partialorder %v495, 0.0
        %v501 = vand.u32 %v495, 2147483648
        %v502 = vsel %vm500, %v501, %v499
        %v503 = vadd.f32 %v502, 1e-06
        %v504 = vrcp.pop %v503
        %v506 = vlaneseq
        %v507 = vshrl.u32 %v506, 7
        %v508 = vsub.s32 0, %v507
        %v509 = vrot.slane %v482, %v508
        %v511 = vmul.f32 %v509, %v504
        %v512 = vmul.f32 %v490, %v511
        %v514 = vlaneseq
        %v515 = vshrl.u32 %v514, 7
        %v516 = vsub.s32 0, %v515
        %v517 = vrot.slane %v483, %v516
        %v519 = vadd.f32 %v512, %v517
        %v520 = vld [vmem:[%s4] sm:$0xff]
        %v521 = vld [vmem:[%s4 + $0x8] sm:$0xff]
        %v522 = vld [vmem:[%s4 + $0x10] sm:$0xff]
        %v523 = vld [vmem:[%s4 + $0x18] sm:$0xff]
        %v524 = vld [vmem:[%s5] sm:$0x1]
        %v526 = vlaneseq
        %v527 = vshrl.u32 %v526, 7
        %v528 = vsub.s32 0, %v527
        %v529 = vrot.slane %v524, %v528
        %v532 = vsel %vm484, %v519, 0
        %534 = vmatprep.subr.mxu0 0.0
        %535 = vmatpush1.msra.mxu0 %v520
        %536 = vmatprep.subr.mxu0 0.0
        %537 = vmatpush1.msra.mxu0 %v521
        %538 = vmatprep.subr.mxu0 0.0
        %539 = vmatpush1.msra.mxu0 %v522
        %540 = vmatprep.subr.mxu0 0.0
        %541 = vmatpush1.msra.mxu0 %v523
        %542 = vmatprep.subr.mxu0 0.0
        %543 = vmatpush1.msra.mxu0 0.0
        %544 = vmatprep.subr.mxu0 0.0
        %545 = vmatpush1.msra.mxu0 0.0
        %546 = vmatprep.subr.mxu0 0.0
        %547 = vmatpush1.msra.mxu0 0.0
        %548 = vmatprep.subr.mxu0 0.0
        %549 = vmatpush1.msra.mxu0 0.0
        %550 = vmatprep.subr.mxu0 0.0
        %551 = vmatpush1.msra.mxu0 0.0
        %552 = vmatprep.subr.mxu0 0.0
        %553 = vmatpush1.msra.mxu0 0.0
        %554 = vmatprep.subr.mxu0 0.0
        %555 = vmatpush1.msra.mxu0 0.0
        %556 = vmatprep.subr.mxu0 0.0
        %557 = vmatpush1.msra.mxu0 0.0
        %558 = vmatprep.subr.mxu0 0.0
        %559 = vmatpush1.msra.mxu0 0.0
        %560 = vmatprep.subr.mxu0 0.0
        %561 = vmatpush1.msra.mxu0 0.0
        %562 = vmatprep.subr.mxu0 0.0
        %563 = vmatpush1.msra.mxu0 0.0
        %564 = vmatprep.subr.mxu0 0.0
        %565 = vmatpush1.msra.mxu0 0.0
        %566 = vmatprep.subr.mxu0 0.0
        %567 = vmatpush1.msra.mxu0 0.0
        %568 = vmatprep.subr.mxu0 0.0
        %569 = vmatpush1.msra.mxu0 0.0
        %570 = vmatprep.subr.mxu0 0.0
        %571 = vmatpush1.msra.mxu0 0.0
        %572 = vmatprep.subr.mxu0 0.0
        %573 = vmatpush1.msra.mxu0 0.0
        %574 = vmatprep.subr.mxu0 0.0
        %575 = vmatpush1.msra.mxu0 0.0
        %576 = vmatprep.subr.mxu0 0.0
        %577 = vmatpush1.msra.mxu0 0.0
        %578 = vmatprep.subr.mxu0 0.0
        %579 = vmatpush1.msra.mxu0 0.0
        %580 = vmatprep.subr.mxu0 0.0
        %581 = vmatpush1.msra.mxu0 0.0
        %582 = vmatprep.subr.mxu0 0.0
        %583 = vmatpush1.msra.mxu0 0.0
        %584 = vmatprep.subr.mxu0 0.0
        %585 = vmatpush1.msra.mxu0 0.0
        %586 = vmatprep.subr.mxu0 0.0
        %587 = vmatpush1.msra.mxu0 0.0
        %588 = vmatprep.subr.mxu0 0.0
        %589 = vmatpush1.msra.mxu0 0.0
        %590 = vmatprep.subr.mxu0 0.0
        %591 = vmatpush1.msra.mxu0 0.0
        %592 = vmatprep.subr.mxu0 0.0
        %593 = vmatpush1.msra.mxu0 0.0
        %594 = vmatprep.subr.mxu0 0.0
        %595 = vmatpush1.msra.mxu0 0.0
        %596 = vmatprep.subr.mxu0 0.0
        %597 = vmatpush1.msra.mxu0 0.0
        %598 = vmatprep.mubr.f32.mxu0 0.0
        %599 = vmatmul.mubr.f32.gmra.mrb[0].mxu0 %v532
        %v600 = vpop.f32.mrb[0].mxu0
        %v601 = vadd.f32 %v529, %v600
        %v602 = vpop.f32.mrb[0].mxu0
        %603 = vdwg.mxu0
        %605 = vrot.lane.b32.xlu0 %v601, 120
        %v606 = vpop.permute.xlu0 %605
        %608 = vrot.lane.b32.xlu0 %v601, 112
        %v609 = vpop.permute.xlu0 %608
        %611 = vrot.lane.b32.xlu0 %v601, 104
        %v612 = vpop.permute.xlu0 %611
        %v614 = vcombine.low %v601, %v609
        %v615 = vcombine.high %v601, %v609
        %v617 = vunpack.c.l.s4 1983009808
        %v618 = vunpack.c.0.s8 %v617
        %v619 = vlaneseq
        %v620 = vshrl.u32 %v619, 7
        %v621 = vsub.s32 %v618, %v620
        %v622 = vrot.slane %v614, %v621
        %v624 = vunpack.c.l.s4 1983009808
        %v625 = vunpack.c.0.s8 %v624
        %v626 = vlaneseq
        %v627 = vshrl.u32 %v626, 7
        %v628 = vsub.s32 %v625, %v627
        %v629 = vrot.slane %v615, %v628
        %v630 = vcombine.low %v606, %v612
        %v631 = vcombine.high %v606, %v612
        %v633 = vunpack.c.l.s4 1983009808
        %v634 = vunpack.c.0.s8 %v633
        %v635 = vlaneseq
        %v636 = vshrl.u32 %v635, 7
        %v637 = vsub.s32 %v634, %v636
        %v638 = vrot.slane %v630, %v637
        %v640 = vunpack.c.l.s4 1983009808
        %v641 = vunpack.c.0.s8 %v640
        %v642 = vlaneseq
        %v643 = vshrl.u32 %v642, 7
        %v644 = vsub.s32 %v641, %v643
        %v645 = vrot.slane %v631, %v644
        %v646 = vcombine.low %v622, %v638
        %v647 = vcombine.high %v622, %v638
        %v649 = vunpack.c.l.s4 1934713408
        %v650 = vunpack.c.0.s8 %v649
        %v651 = vlaneseq
        %v652 = vshrl.u32 %v651, 7
        %v653 = vsub.s32 %v650, %v652
        %v654 = vrot.slane %v646, %v653
        %v656 = vunpack.c.l.s4 1934713408
        %v657 = vunpack.c.0.s8 %v656
        %v658 = vlaneseq
        %v659 = vshrl.u32 %v658, 7
        %v660 = vsub.s32 %v657, %v659
        %v661 = vrot.slane %v647, %v660
        %v662 = vcombine.low %v629, %v645
        %v663 = vcombine.high %v629, %v645
        %v665 = vunpack.c.l.s4 1934713408
        %v666 = vunpack.c.0.s8 %v665
        %v667 = vlaneseq
        %v668 = vshrl.u32 %v667, 7
        %v669 = vsub.s32 %v666, %v668
        %v670 = vrot.slane %v662, %v669
        %v672 = vunpack.c.l.s4 1934713408
        %v673 = vunpack.c.0.s8 %v672
        %v674 = vlaneseq
        %v675 = vshrl.u32 %v674, 7
        %v676 = vsub.s32 %v673, %v675
        %v677 = vrot.slane %v663, %v676
        %v678 = vcombine.high %v654, 0.0
        %v679 = vcombine.high %v661, 0.0
        %v680 = vcombine.high %v670, 0.0
        %v681 = vcombine.high %v677, 0.0
        %v682 = vcombine.low %v654, %v661
        %v684 = vunpack.c.l.s4 1983009808
        %v685 = vunpack.c.0.s8 %v684
        %v686 = vlaneseq
        %v687 = vshrl.u32 %v686, 7
        %v688 = vsub.s32 %v685, %v687
        %v689 = vrot.slane %v682, %v688
        %v690 = vcombine.low %v678, %v679
        %v692 = vunpack.c.l.s4 1983009808
        %v693 = vunpack.c.0.s8 %v692
        %v694 = vlaneseq
        %v695 = vshrl.u32 %v694, 7
        %v696 = vsub.s32 %v693, %v695
        %v697 = vrot.slane %v690, %v696
        %v698 = vcombine.low %v670, %v677
        %v700 = vunpack.c.l.s4 1983009808
        %v701 = vunpack.c.0.s8 %v700
        %v702 = vlaneseq
        %v703 = vshrl.u32 %v702, 7
        %v704 = vsub.s32 %v701, %v703
        %v705 = vrot.slane %v698, %v704
        %v706 = vcombine.low %v680, %v681
        %v708 = vunpack.c.l.s4 1983009808
        %v709 = vunpack.c.0.s8 %v708
        %v710 = vlaneseq
        %v711 = vshrl.u32 %v710, 7
        %v712 = vsub.s32 %v709, %v711
        %v713 = vrot.slane %v706, %v712
        %v714 = vcombine.low %v689, %v697
        %v715 = vcombine.high %v689, %v697
        %v717 = vunpack.c.l.s4 1934713408
        %v718 = vunpack.c.0.s8 %v717
        %v719 = vlaneseq
        %v720 = vshrl.u32 %v719, 7
        %v721 = vsub.s32 %v718, %v720
        %v722 = vrot.slane %v714, %v721
        %v724 = vunpack.c.l.s4 1934713408
        %v725 = vunpack.c.0.s8 %v724
        %v726 = vlaneseq
        %v727 = vshrl.u32 %v726, 7
        %v728 = vsub.s32 %v725, %v727
        %v729 = vrot.slane %v715, %v728
        %v730 = vcombine.low %v705, %v713
        %v731 = vcombine.high %v705, %v713
        %v733 = vunpack.c.l.s4 1934713408
        %v734 = vunpack.c.0.s8 %v733
        %v735 = vlaneseq
        %v736 = vshrl.u32 %v735, 7
        %v737 = vsub.s32 %v734, %v736
        %v738 = vrot.slane %v730, %v737
        %v740 = vunpack.c.l.s4 1934713408
        %v741 = vunpack.c.0.s8 %v740
        %v742 = vlaneseq
        %v743 = vshrl.u32 %v742, 7
        %v744 = vsub.s32 %v741, %v743
        %v745 = vrot.slane %v731, %v744
        %v746 = vcombine.low %v722, %v738
        %v747 = vcombine.high %v722, %v738
        %v748 = vcombine.low %v729, %v745
        %v749 = vcombine.high %v729, %v745
        %750 = vrot.lane.b32.xlu0 %v601, 96
        %v751 = vpop.permute.xlu0 %750
        %752 = vrot.lane.b32.xlu0 %v606, 96
        %v753 = vpop.permute.xlu0 %752
        %754 = vrot.lane.b32.xlu0 %v609, 96
        %v755 = vpop.permute.xlu0 %754
        %756 = vrot.lane.b32.xlu0 %v612, 96
        %v757 = vpop.permute.xlu0 %756
        %v762 = vcombine.low %v751, %v755
        %v763 = vcombine.high %v751, %v755
        %v765 = vunpack.c.l.s4 1983009808
        %v766 = vunpack.c.0.s8 %v765
        %v767 = vlaneseq
        %v768 = vshrl.u32 %v767, 7
        %v769 = vsub.s32 %v766, %v768
        %v770 = vrot.slane %v762, %v769
        %v772 = vunpack.c.l.s4 1983009808
        %v773 = vunpack.c.0.s8 %v772
        %v774 = vlaneseq
        %v775 = vshrl.u32 %v774, 7
        %v776 = vsub.s32 %v773, %v775
        %v777 = vrot.slane %v763, %v776
        %v778 = vcombine.low %v753, %v757
        %v779 = vcombine.high %v753, %v757
        %v781 = vunpack.c.l.s4 1983009808
        %v782 = vunpack.c.0.s8 %v781
        %v783 = vlaneseq
        %v784 = vshrl.u32 %v783, 7
        %v785 = vsub.s32 %v782, %v784
        %v786 = vrot.slane %v778, %v785
        %v788 = vunpack.c.l.s4 1983009808
        %v789 = vunpack.c.0.s8 %v788
        %v790 = vlaneseq
        %v791 = vshrl.u32 %v790, 7
        %v792 = vsub.s32 %v789, %v791
        %v793 = vrot.slane %v779, %v792
        %v794 = vcombine.low %v770, %v786
        %v795 = vcombine.high %v770, %v786
        %v797 = vunpack.c.l.s4 1934713408
        %v798 = vunpack.c.0.s8 %v797
        %v799 = vlaneseq
        %v800 = vshrl.u32 %v799, 7
        %v801 = vsub.s32 %v798, %v800
        %v802 = vrot.slane %v794, %v801
        %v804 = vunpack.c.l.s4 1934713408
        %v805 = vunpack.c.0.s8 %v804
        %v806 = vlaneseq
        %v807 = vshrl.u32 %v806, 7
        %v808 = vsub.s32 %v805, %v807
        %v809 = vrot.slane %v795, %v808
        %v810 = vcombine.low %v777, %v793
        %v811 = vcombine.high %v777, %v793
        %v813 = vunpack.c.l.s4 1934713408
        %v814 = vunpack.c.0.s8 %v813
        %v815 = vlaneseq
        %v816 = vshrl.u32 %v815, 7
        %v817 = vsub.s32 %v814, %v816
        %v818 = vrot.slane %v810, %v817
        %v820 = vunpack.c.l.s4 1934713408
        %v821 = vunpack.c.0.s8 %v820
        %v822 = vlaneseq
        %v823 = vshrl.u32 %v822, 7
        %v824 = vsub.s32 %v821, %v823
        %v825 = vrot.slane %v811, %v824
        %v826 = vcombine.high %v802, 0.0
        %v827 = vcombine.high %v809, 0.0
        %v828 = vcombine.high %v818, 0.0
        %v829 = vcombine.high %v825, 0.0
        %v830 = vcombine.low %v802, %v809
        %v832 = vunpack.c.l.s4 1983009808
        %v833 = vunpack.c.0.s8 %v832
        %v834 = vlaneseq
        %v835 = vshrl.u32 %v834, 7
        %v836 = vsub.s32 %v833, %v835
        %v837 = vrot.slane %v830, %v836
        %v838 = vcombine.low %v826, %v827
        %v840 = vunpack.c.l.s4 1983009808
        %v841 = vunpack.c.0.s8 %v840
        %v842 = vlaneseq
        %v843 = vshrl.u32 %v842, 7
        %v844 = vsub.s32 %v841, %v843
        %v845 = vrot.slane %v838, %v844
        %v846 = vcombine.low %v818, %v825
        %v848 = vunpack.c.l.s4 1983009808
        %v849 = vunpack.c.0.s8 %v848
        %v850 = vlaneseq
        %v851 = vshrl.u32 %v850, 7
        %v852 = vsub.s32 %v849, %v851
        %v853 = vrot.slane %v846, %v852
        %v854 = vcombine.low %v828, %v829
        %v856 = vunpack.c.l.s4 1983009808
        %v857 = vunpack.c.0.s8 %v856
        %v858 = vlaneseq
        %v859 = vshrl.u32 %v858, 7
        %v860 = vsub.s32 %v857, %v859
        %v861 = vrot.slane %v854, %v860
        %v862 = vcombine.low %v837, %v845
        %v863 = vcombine.high %v837, %v845
        %v865 = vunpack.c.l.s4 1934713408
        %v866 = vunpack.c.0.s8 %v865
        %v867 = vlaneseq
        %v868 = vshrl.u32 %v867, 7
        %v869 = vsub.s32 %v866, %v868
        %v870 = vrot.slane %v862, %v869
        %v872 = vunpack.c.l.s4 1934713408
        %v873 = vunpack.c.0.s8 %v872
        %v874 = vlaneseq
        %v875 = vshrl.u32 %v874, 7
        %v876 = vsub.s32 %v873, %v875
        %v877 = vrot.slane %v863, %v876
        %v878 = vcombine.low %v853, %v861
        %v879 = vcombine.high %v853, %v861
        %v881 = vunpack.c.l.s4 1934713408
        %v882 = vunpack.c.0.s8 %v881
        %v883 = vlaneseq
        %v884 = vshrl.u32 %v883, 7
        %v885 = vsub.s32 %v882, %v884
        %v886 = vrot.slane %v878, %v885
        %v888 = vunpack.c.l.s4 1934713408
        %v889 = vunpack.c.0.s8 %v888
        %v890 = vlaneseq
        %v891 = vshrl.u32 %v890, 7
        %v892 = vsub.s32 %v889, %v891
        %v893 = vrot.slane %v879, %v892
        %v894 = vcombine.low %v870, %v886
        %v895 = vcombine.high %v870, %v886
        %v896 = vcombine.low %v877, %v893
        %v897 = vcombine.high %v877, %v893
        %898 = vrot.lane.b32.xlu0 %v601, 64
        %v899 = vpop.permute.xlu0 %898
        %900 = vrot.lane.b32.xlu0 %v606, 64
        %v901 = vpop.permute.xlu0 %900
        %902 = vrot.lane.b32.xlu0 %v609, 64
        %v903 = vpop.permute.xlu0 %902
        %904 = vrot.lane.b32.xlu0 %v612, 64
        %v905 = vpop.permute.xlu0 %904
        %v910 = vcombine.low %v899, %v903
        %v911 = vcombine.high %v899, %v903
        %v913 = vunpack.c.l.s4 1983009808
        %v914 = vunpack.c.0.s8 %v913
        %v915 = vlaneseq
        %v916 = vshrl.u32 %v915, 7
        %v917 = vsub.s32 %v914, %v916
        %v918 = vrot.slane %v910, %v917
        %v920 = vunpack.c.l.s4 1983009808
        %v921 = vunpack.c.0.s8 %v920
        %v922 = vlaneseq
        %v923 = vshrl.u32 %v922, 7
        %v924 = vsub.s32 %v921, %v923
        %v925 = vrot.slane %v911, %v924
        %v926 = vcombine.low %v901, %v905
        %v927 = vcombine.high %v901, %v905
        %v929 = vunpack.c.l.s4 1983009808
        %v930 = vunpack.c.0.s8 %v929
        %v931 = vlaneseq
        %v932 = vshrl.u32 %v931, 7
        %v933 = vsub.s32 %v930, %v932
        %v934 = vrot.slane %v926, %v933
        %v936 = vunpack.c.l.s4 1983009808
        %v937 = vunpack.c.0.s8 %v936
        %v938 = vlaneseq
        %v939 = vshrl.u32 %v938, 7
        %v940 = vsub.s32 %v937, %v939
        %v941 = vrot.slane %v927, %v940
        %v942 = vcombine.low %v918, %v934
        %v943 = vcombine.high %v918, %v934
        %v945 = vunpack.c.l.s4 1934713408
        %v946 = vunpack.c.0.s8 %v945
        %v947 = vlaneseq
        %v948 = vshrl.u32 %v947, 7
        %v949 = vsub.s32 %v946, %v948
        %v950 = vrot.slane %v942, %v949
        %v952 = vunpack.c.l.s4 1934713408
        %v953 = vunpack.c.0.s8 %v952
        %v954 = vlaneseq
        %v955 = vshrl.u32 %v954, 7
        %v956 = vsub.s32 %v953, %v955
        %v957 = vrot.slane %v943, %v956
        %v958 = vcombine.low %v925, %v941
        %v959 = vcombine.high %v925, %v941
        %v961 = vunpack.c.l.s4 1934713408
        %v962 = vunpack.c.0.s8 %v961
        %v963 = vlaneseq
        %v964 = vshrl.u32 %v963, 7
        %v965 = vsub.s32 %v962, %v964
        %v966 = vrot.slane %v958, %v965
        %v968 = vunpack.c.l.s4 1934713408
        %v969 = vunpack.c.0.s8 %v968
        %v970 = vlaneseq
        %v971 = vshrl.u32 %v970, 7
        %v972 = vsub.s32 %v969, %v971
        %v973 = vrot.slane %v959, %v972
        %v974 = vcombine.high %v950, 0.0
        %v975 = vcombine.high %v957, 0.0
        %v976 = vcombine.high %v966, 0.0
        %v977 = vcombine.high %v973, 0.0
        %v978 = vcombine.low %v950, %v957
        %v980 = vunpack.c.l.s4 1983009808
        %v981 = vunpack.c.0.s8 %v980
        %v982 = vlaneseq
        %v983 = vshrl.u32 %v982, 7
        %v984 = vsub.s32 %v981, %v983
        %v985 = vrot.slane %v978, %v984
        %v986 = vcombine.low %v974, %v975
        %v988 = vunpack.c.l.s4 1983009808
        %v989 = vunpack.c.0.s8 %v988
        %v990 = vlaneseq
        %v991 = vshrl.u32 %v990, 7
        %v992 = vsub.s32 %v989, %v991
        %v993 = vrot.slane %v986, %v992
        %v994 = vcombine.low %v966, %v973
        %v996 = vunpack.c.l.s4 1983009808
        %v997 = vunpack.c.0.s8 %v996
        %v998 = vlaneseq
        %v999 = vshrl.u32 %v998, 7
        %v1000 = vsub.s32 %v997, %v999
        %v1001 = vrot.slane %v994, %v1000
        %v1002 = vcombine.low %v976, %v977
        %v1004 = vunpack.c.l.s4 1983009808
        %v1005 = vunpack.c.0.s8 %v1004
        %v1006 = vlaneseq
        %v1007 = vshrl.u32 %v1006, 7
        %v1008 = vsub.s32 %v1005, %v1007
        %v1009 = vrot.slane %v1002, %v1008
        %v1010 = vcombine.low %v985, %v993
        %v1011 = vcombine.high %v985, %v993
        %v1013 = vunpack.c.l.s4 1934713408
        %v1014 = vunpack.c.0.s8 %v1013
        %v1015 = vlaneseq
        %v1016 = vshrl.u32 %v1015, 7
        %v1017 = vsub.s32 %v1014, %v1016
        %v1018 = vrot.slane %v1010, %v1017
        %v1020 = vunpack.c.l.s4 1934713408
        %v1021 = vunpack.c.0.s8 %v1020
        %v1022 = vlaneseq
        %v1023 = vshrl.u32 %v1022, 7
        %v1024 = vsub.s32 %v1021, %v1023
        %v1025 = vrot.slane %v1011, %v1024
        %v1026 = vcombine.low %v1001, %v1009
        %v1027 = vcombine.high %v1001, %v1009
        %v1029 = vunpack.c.l.s4 1934713408
        %v1030 = vunpack.c.0.s8 %v1029
        %v1031 = vlaneseq
        %v1032 = vshrl.u32 %v1031, 7
        %v1033 = vsub.s32 %v1030, %v1032
        %v1034 = vrot.slane %v1026, %v1033
        %v1036 = vunpack.c.l.s4 1934713408
        %v1037 = vunpack.c.0.s8 %v1036
        %v1038 = vlaneseq
        %v1039 = vshrl.u32 %v1038, 7
        %v1040 = vsub.s32 %v1037, %v1039
        %v1041 = vrot.slane %v1027, %v1040
        %v1042 = vcombine.low %v1018, %v1034
        %v1043 = vcombine.high %v1018, %v1034
        %v1044 = vcombine.low %v1025, %v1041
        %v1045 = vcombine.high %v1025, %v1041
        %vm1046 = vcmask 64512
        %v1048 = vsel %vm1046, %v746, 0
        %v1051 = vsel %vm1046, %v894, 0
        %1053 = vmatprep.subr.mxu0 0.0
        %1054 = vmatpush1.xpose.msra.mxu0 %v1051
        %1055 = vmatprep.subr.mxu0 0.0
        %1056 = vmatpush1.xpose.msra.mxu0 0.0
        %1057 = vmatprep.subr.mxu0 0.0
        %1058 = vmatpush1.xpose.msra.mxu0 0.0
        %1059 = vmatprep.subr.mxu0 0.0
        %1060 = vmatpush1.xpose.msra.mxu0 0.0
        %1061 = vmatprep.subr.mxu0 0.0
        %1062 = vmatpush1.xpose.msra.mxu0 0.0
        %1063 = vmatprep.subr.mxu0 0.0
        %1064 = vmatpush1.xpose.msra.mxu0 0.0
        %1065 = vmatprep.subr.mxu0 0.0
        %1066 = vmatpush1.xpose.msra.mxu0 0.0
        %1067 = vmatprep.subr.mxu0 0.0
        %1068 = vmatpush1.xpose.msra.mxu0 0.0
        %1069 = vmatprep.subr.mxu0 0.0
        %1070 = vmatpush1.xpose.msra.mxu0 0.0
        %1071 = vmatprep.subr.mxu0 0.0
        %1072 = vmatpush1.xpose.msra.mxu0 0.0
        %1073 = vmatprep.subr.mxu0 0.0
        %1074 = vmatpush1.xpose.msra.mxu0 0.0
        %1075 = vmatprep.subr.mxu0 0.0
        %1076 = vmatpush1.xpose.msra.mxu0 0.0
        %1077 = vmatprep.subr.mxu0 0.0
        %1078 = vmatpush1.xpose.msra.mxu0 0.0
        %1079 = vmatprep.subr.mxu0 0.0
        %1080 = vmatpush1.xpose.msra.mxu0 0.0
        %1081 = vmatprep.subr.mxu0 0.0
        %1082 = vmatpush1.xpose.msra.mxu0 0.0
        %1083 = vmatprep.subr.mxu0 0.0
        %1084 = vmatpush1.xpose.msra.mxu0 0.0
        %1085 = vmatprep.subr.mxu0 0.0
        %1086 = vmatpush1.xpose.msra.mxu0 0.0
        %1087 = vmatprep.subr.mxu0 0.0
        %1088 = vmatpush1.xpose.msra.mxu0 0.0
        %1089 = vmatprep.subr.mxu0 0.0
        %1090 = vmatpush1.xpose.msra.mxu0 0.0
        %1091 = vmatprep.subr.mxu0 0.0
        %1092 = vmatpush1.xpose.msra.mxu0 0.0
        %1093 = vmatprep.subr.mxu0 0.0
        %1094 = vmatpush1.xpose.msra.mxu0 0.0
        %1095 = vmatprep.subr.mxu0 0.0
        %1096 = vmatpush1.xpose.msra.mxu0 0.0
        %1097 = vmatprep.subr.mxu0 0.0
        %1098 = vmatpush1.xpose.msra.mxu0 0.0
        %1099 = vmatprep.subr.mxu0 0.0
        %1100 = vmatpush1.xpose.msra.mxu0 0.0
        %1101 = vmatprep.subr.mxu0 0.0
        %1102 = vmatpush1.xpose.msra.mxu0 0.0
        %1103 = vmatprep.subr.mxu0 0.0
        %1104 = vmatpush1.xpose.msra.mxu0 0.0
        %1105 = vmatprep.subr.mxu0 0.0
        %1106 = vmatpush1.xpose.msra.mxu0 0.0
        %1107 = vmatprep.subr.mxu0 0.0
        %1108 = vmatpush1.xpose.msra.mxu0 0.0
        %1109 = vmatprep.subr.mxu0 0.0
        %1110 = vmatpush1.xpose.msra.mxu0 0.0
        %1111 = vmatprep.subr.mxu0 0.0
        %1112 = vmatpush1.xpose.msra.mxu0 0.0
        %1113 = vmatprep.subr.mxu0 0.0
        %1114 = vmatpush1.xpose.msra.mxu0 0.0
        %1115 = vmatprep.subr.mxu0 0.0
        %1116 = vmatpush1.xpose.msra.mxu0 0.0
        %1117 = vmatprep.mubr.f32.mxu0 0.0
        %1118 = vmatmul.mubr.f32.gmra.mrb[0].mxu0 %v1048
        %v1119 = vpop.f32.mrb[0].mxu0
        %v1120 = vadd.f32 %v481, %v1119
        %v1121 = vpop.f32.mrb[0].mxu0
        %1122 = vdwg.mxu0
        %v1124 = vsel %vm1046, %v747, 0
        %v1127 = vsel %vm1046, %v895, 0
        %1129 = vmatprep.subr.mxu0 0.0
        %1130 = vmatpush1.xpose.msra.mxu0 %v1127
        %1131 = vmatprep.subr.mxu0 0.0
        %1132 = vmatpush1.xpose.msra.mxu0 0.0
        %1133 = vmatprep.subr.mxu0 0.0
        %1134 = vmatpush1.xpose.msra.mxu0 0.0
        %1135 = vmatprep.subr.mxu0 0.0
        %1136 = vmatpush1.xpose.msra.mxu0 0.0
        %1137 = vmatprep.subr.mxu0 0.0
        %1138 = vmatpush1.xpose.msra.mxu0 0.0
        %1139 = vmatprep.subr.mxu0 0.0
        %1140 = vmatpush1.xpose.msra.mxu0 0.0
        %1141 = vmatprep.subr.mxu0 0.0
        %1142 = vmatpush1.xpose.msra.mxu0 0.0
        %1143 = vmatprep.subr.mxu0 0.0
        %1144 = vmatpush1.xpose.msra.mxu0 0.0
        %1145 = vmatprep.subr.mxu0 0.0
        %1146 = vmatpush1.xpose.msra.mxu0 0.0
        %1147 = vmatprep.subr.mxu0 0.0
        %1148 = vmatpush1.xpose.msra.mxu0 0.0
        %1149 = vmatprep.subr.mxu0 0.0
        %1150 = vmatpush1.xpose.msra.mxu0 0.0
        %1151 = vmatprep.subr.mxu0 0.0
        %1152 = vmatpush1.xpose.msra.mxu0 0.0
        %1153 = vmatprep.subr.mxu0 0.0
        %1154 = vmatpush1.xpose.msra.mxu0 0.0
        %1155 = vmatprep.subr.mxu0 0.0
        %1156 = vmatpush1.xpose.msra.mxu0 0.0
        %1157 = vmatprep.subr.mxu0 0.0
        %1158 = vmatpush1.xpose.msra.mxu0 0.0
        %1159 = vmatprep.subr.mxu0 0.0
        %1160 = vmatpush1.xpose.msra.mxu0 0.0
        %1161 = vmatprep.subr.mxu0 0.0
        %1162 = vmatpush1.xpose.msra.mxu0 0.0
        %1163 = vmatprep.subr.mxu0 0.0
        %1164 = vmatpush1.xpose.msra.mxu0 0.0
        %1165 = vmatprep.subr.mxu0 0.0
        %1166 = vmatpush1.xpose.msra.mxu0 0.0
        %1167 = vmatprep.subr.mxu0 0.0
        %1168 = vmatpush1.xpose.msra.mxu0 0.0
        %1169 = vmatprep.subr.mxu0 0.0
        %1170 = vmatpush1.xpose.msra.mxu0 0.0
        %1171 = vmatprep.subr.mxu0 0.0
        %1172 = vmatpush1.xpose.msra.mxu0 0.0
        %1173 = vmatprep.subr.mxu0 0.0
        %1174 = vmatpush1.xpose.msra.mxu0 0.0
        %1175 = vmatprep.subr.mxu0 0.0
        %1176 = vmatpush1.xpose.msra.mxu0 0.0
        %1177 = vmatprep.subr.mxu0 0.0
        %1178 = vmatpush1.xpose.msra.mxu0 0.0
        %1179 = vmatprep.subr.mxu0 0.0
        %1180 = vmatpush1.xpose.msra.mxu0 0.0
        %1181 = vmatprep.subr.mxu0 0.0
        %1182 = vmatpush1.xpose.msra.mxu0 0.0
        %1183 = vmatprep.subr.mxu0 0.0
        %1184 = vmatpush1.xpose.msra.mxu0 0.0
        %1185 = vmatprep.subr.mxu0 0.0
        %1186 = vmatpush1.xpose.msra.mxu0 0.0
        %1187 = vmatprep.subr.mxu0 0.0
        %1188 = vmatpush1.xpose.msra.mxu0 0.0
        %1189 = vmatprep.subr.mxu0 0.0
        %1190 = vmatpush1.xpose.msra.mxu0 0.0
        %1191 = vmatprep.subr.mxu0 0.0
        %1192 = vmatpush1.xpose.msra.mxu0 0.0
        %1193 = vmatprep.mubr.f32.mxu0 0.0
        %1194 = vmatmul.mubr.f32.gmra.mrb[0].mxu0 %v1124
        %v1195 = vpop.f32.mrb[0].mxu0
        %v1196 = vadd.f32 %v481, %v1195
        %v1197 = vpop.f32.mrb[0].mxu0
        %1198 = vdwg.mxu0
        %v1200 = vsel %vm1046, %v748, 0
        %v1203 = vsel %vm1046, %v896, 0
        %1205 = vmatprep.subr.mxu0 0.0
        %1206 = vmatpush1.xpose.msra.mxu0 %v1203
        %1207 = vmatprep.subr.mxu0 0.0
        %1208 = vmatpush1.xpose.msra.mxu0 0.0
        %1209 = vmatprep.subr.mxu0 0.0
        %1210 = vmatpush1.xpose.msra.mxu0 0.0
        %1211 = vmatprep.subr.mxu0 0.0
        %1212 = vmatpush1.xpose.msra.mxu0 0.0
        %1213 = vmatprep.subr.mxu0 0.0
        %1214 = vmatpush1.xpose.msra.mxu0 0.0
        %1215 = vmatprep.subr.mxu0 0.0
        %1216 = vmatpush1.xpose.msra.mxu0 0.0
        %1217 = vmatprep.subr.mxu0 0.0
        %1218 = vmatpush1.xpose.msra.mxu0 0.0
        %1219 = vmatprep.subr.mxu0 0.0
        %1220 = vmatpush1.xpose.msra.mxu0 0.0
        %1221 = vmatprep.subr.mxu0 0.0
        %1222 = vmatpush1.xpose.msra.mxu0 0.0
        %1223 = vmatprep.subr.mxu0 0.0
        %1224 = vmatpush1.xpose.msra.mxu0 0.0
        %1225 = vmatprep.subr.mxu0 0.0
        %1226 = vmatpush1.xpose.msra.mxu0 0.0
        %1227 = vmatprep.subr.mxu0 0.0
        %1228 = vmatpush1.xpose.msra.mxu0 0.0
        %1229 = vmatprep.subr.mxu0 0.0
        %1230 = vmatpush1.xpose.msra.mxu0 0.0
        %1231 = vmatprep.subr.mxu0 0.0
        %1232 = vmatpush1.xpose.msra.mxu0 0.0
        %1233 = vmatprep.subr.mxu0 0.0
        %1234 = vmatpush1.xpose.msra.mxu0 0.0
        %1235 = vmatprep.subr.mxu0 0.0
        %1236 = vmatpush1.xpose.msra.mxu0 0.0
        %1237 = vmatprep.subr.mxu0 0.0
        %1238 = vmatpush1.xpose.msra.mxu0 0.0
        %1239 = vmatprep.subr.mxu0 0.0
        %1240 = vmatpush1.xpose.msra.mxu0 0.0
        %1241 = vmatprep.subr.mxu0 0.0
        %1242 = vmatpush1.xpose.msra.mxu0 0.0
        %1243 = vmatprep.subr.mxu0 0.0
        %1244 = vmatpush1.xpose.msra.mxu0 0.0
        %1245 = vmatprep.subr.mxu0 0.0
        %1246 = vmatpush1.xpose.msra.mxu0 0.0
        %1247 = vmatprep.subr.mxu0 0.0
        %1248 = vmatpush1.xpose.msra.mxu0 0.0
        %1249 = vmatprep.subr.mxu0 0.0
        %1250 = vmatpush1.xpose.msra.mxu0 0.0
        %1251 = vmatprep.subr.mxu0 0.0
        %1252 = vmatpush1.xpose.msra.mxu0 0.0
        %1253 = vmatprep.subr.mxu0 0.0
        %1254 = vmatpush1.xpose.msra.mxu0 0.0
        %1255 = vmatprep.subr.mxu0 0.0
        %1256 = vmatpush1.xpose.msra.mxu0 0.0
        %1257 = vmatprep.subr.mxu0 0.0
        %1258 = vmatpush1.xpose.msra.mxu0 0.0
        %1259 = vmatprep.subr.mxu0 0.0
        %1260 = vmatpush1.xpose.msra.mxu0 0.0
        %1261 = vmatprep.subr.mxu0 0.0
        %1262 = vmatpush1.xpose.msra.mxu0 0.0
        %1263 = vmatprep.subr.mxu0 0.0
        %1264 = vmatpush1.xpose.msra.mxu0 0.0
        %1265 = vmatprep.subr.mxu0 0.0
        %1266 = vmatpush1.xpose.msra.mxu0 0.0
        %1267 = vmatprep.subr.mxu0 0.0
        %1268 = vmatpush1.xpose.msra.mxu0 0.0
        %1269 = vmatprep.mubr.f32.mxu0 0.0
        %1270 = vmatmul.mubr.f32.gmra.mrb[0].mxu0 %v1200
        %v1271 = vpop.f32.mrb[0].mxu0
        %v1272 = vadd.f32 %v481, %v1271
        %v1273 = vpop.f32.mrb[0].mxu0
        %1274 = vdwg.mxu0
        %v1276 = vsel %vm1046, %v749, 0
        %v1279 = vsel %vm1046, %v897, 0
        %1281 = vmatprep.subr.mxu0 0.0
        %1282 = vmatpush1.xpose.msra.mxu0 %v1279
        %1283 = vmatprep.subr.mxu0 0.0
        %1284 = vmatpush1.xpose.msra.mxu0 0.0
        %1285 = vmatprep.subr.mxu0 0.0
        %1286 = vmatpush1.xpose.msra.mxu0 0.0
        %1287 = vmatprep.subr.mxu0 0.0
        %1288 = vmatpush1.xpose.msra.mxu0 0.0
        %1289 = vmatprep.subr.mxu0 0.0
        %1290 = vmatpush1.xpose.msra.mxu0 0.0
        %1291 = vmatprep.subr.mxu0 0.0
        %1292 = vmatpush1.xpose.msra.mxu0 0.0
        %1293 = vmatprep.subr.mxu0 0.0
        %1294 = vmatpush1.xpose.msra.mxu0 0.0
        %1295 = vmatprep.subr.mxu0 0.0
        %1296 = vmatpush1.xpose.msra.mxu0 0.0
        %1297 = vmatprep.subr.mxu0 0.0
        %1298 = vmatpush1.xpose.msra.mxu0 0.0
        %1299 = vmatprep.subr.mxu0 0.0
        %1300 = vmatpush1.xpose.msra.mxu0 0.0
        %1301 = vmatprep.subr.mxu0 0.0
        %1302 = vmatpush1.xpose.msra.mxu0 0.0
        %1303 = vmatprep.subr.mxu0 0.0
        %1304 = vmatpush1.xpose.msra.mxu0 0.0
        %1305 = vmatprep.subr.mxu0 0.0
        %1306 = vmatpush1.xpose.msra.mxu0 0.0
        %1307 = vmatprep.subr.mxu0 0.0
        %1308 = vmatpush1.xpose.msra.mxu0 0.0
        %1309 = vmatprep.subr.mxu0 0.0
        %1310 = vmatpush1.xpose.msra.mxu0 0.0
        %1311 = vmatprep.subr.mxu0 0.0
        %1312 = vmatpush1.xpose.msra.mxu0 0.0
        %1313 = vmatprep.subr.mxu0 0.0
        %1314 = vmatpush1.xpose.msra.mxu0 0.0
        %1315 = vmatprep.subr.mxu0 0.0
        %1316 = vmatpush1.xpose.msra.mxu0 0.0
        %1317 = vmatprep.subr.mxu0 0.0
        %1318 = vmatpush1.xpose.msra.mxu0 0.0
        %1319 = vmatprep.subr.mxu0 0.0
        %1320 = vmatpush1.xpose.msra.mxu0 0.0
        %1321 = vmatprep.subr.mxu0 0.0
        %1322 = vmatpush1.xpose.msra.mxu0 0.0
        %1323 = vmatprep.subr.mxu0 0.0
        %1324 = vmatpush1.xpose.msra.mxu0 0.0
        %1325 = vmatprep.subr.mxu0 0.0
        %1326 = vmatpush1.xpose.msra.mxu0 0.0
        %1327 = vmatprep.subr.mxu0 0.0
        %1328 = vmatpush1.xpose.msra.mxu0 0.0
        %1329 = vmatprep.subr.mxu0 0.0
        %1330 = vmatpush1.xpose.msra.mxu0 0.0
        %1331 = vmatprep.subr.mxu0 0.0
        %1332 = vmatpush1.xpose.msra.mxu0 0.0
        %1333 = vmatprep.subr.mxu0 0.0
        %1334 = vmatpush1.xpose.msra.mxu0 0.0
        %1335 = vmatprep.subr.mxu0 0.0
        %1336 = vmatpush1.xpose.msra.mxu0 0.0
        %1337 = vmatprep.subr.mxu0 0.0
        %1338 = vmatpush1.xpose.msra.mxu0 0.0
        %1339 = vmatprep.subr.mxu0 0.0
        %1340 = vmatpush1.xpose.msra.mxu0 0.0
        %1341 = vmatprep.subr.mxu0 0.0
        %1342 = vmatpush1.xpose.msra.mxu0 0.0
        %1343 = vmatprep.subr.mxu0 0.0
        %1344 = vmatpush1.xpose.msra.mxu0 0.0
        %1345 = vmatprep.mubr.f32.mxu0 0.0
        %1346 = vmatmul.mubr.f32.gmra.mrb[0].mxu0 %v1276
        %v1347 = vpop.f32.mrb[0].mxu0
        %v1348 = vadd.f32 %v481, %v1347
        %v1349 = vpop.f32.mrb[0].mxu0
        %1350 = vdwg.mxu0
        %v1351 = vsel %vm1046, %v1120, -inf
        %1352 = vmax.xlane.f32.xlu0 %v1351
        %v1353 = vpop.xlane.xlu0 %1352
        %v1354 = vsel %vm1046, %v1196, -inf
        %1355 = vmax.xlane.f32.xlu0 %v1354
        %v1356 = vpop.xlane.xlu0 %1355
        %v1357 = vsel %vm1046, %v1272, -inf
        %1358 = vmax.xlane.f32.xlu0 %v1357
        %v1359 = vpop.xlane.xlu0 %1358
        %v1360 = vsel %vm1046, %v1348, -inf
        %1361 = vmax.xlane.f32.xlu0 %v1360
        %v1362 = vpop.xlane.xlu0 %1361
        %v1363 = vsub.f32 %v1120, %v1353
        %v1364 = vsub.f32 %v1196, %v1356
        %v1365 = vsub.f32 %v1272, %v1359
        %v1366 = vsub.f32 %v1348, %v1362
        %v1367 = vmul.f32 %v1363, 1.442695
        %v1368 = vpow.pop %v1367
        %v1369 = vmul.f32 %v1364, 1.442695
        %v1370 = vpow.pop %v1369
        %v1371 = vmul.f32 %v1365, 1.442695
        %v1372 = vpow.pop %v1371
        %v1373 = vmul.f32 %v1366, 1.442695
        %v1374 = vpow.pop %v1373
        %v1375 = vsel %vm1046, %v1368, 0.0
        %1376 = vadd.xlane.f32.xlu0 %v1375
        %v1377 = vpop.xlane.xlu0 %1376
        %v1378 = vsel %vm1046, %v1370, 0.0
        %1379 = vadd.xlane.f32.xlu0 %v1378
        %v1380 = vpop.xlane.xlu0 %1379
        %v1381 = vsel %vm1046, %v1372, 0.0
        %1382 = vadd.xlane.f32.xlu0 %v1381
        %v1383 = vpop.xlane.xlu0 %1382
        %v1384 = vsel %vm1046, %v1374, 0.0
        %1385 = vadd.xlane.f32.xlu0 %v1384
        %v1386 = vpop.xlane.xlu0 %1385
        %v1387 = vrcp.pop %v1377
        %v1388 = vrcp.pop %v1380
        %v1389 = vrcp.pop %v1383
        %v1390 = vrcp.pop %v1386
        %v1391 = vmul.f32 %v1368, %v1387
        %v1392 = vmul.f32 %v1370, %v1388
        %v1393 = vmul.f32 %v1372, %v1389
        %v1394 = vmul.f32 %v1374, %v1390
        %v1396 = vsel %vm1046, %v1391, 0
        %1398 = vmatprep.subr.mxu0 0.0
        %1399 = vmatpush1.msra.mxu0 %v1042
        %1400 = vmatprep.subr.mxu0 0.0
        %1401 = vmatpush1.msra.mxu0 0.0
        %1402 = vmatprep.subr.mxu0 0.0
        %1403 = vmatpush1.msra.mxu0 0.0
        %1404 = vmatprep.subr.mxu0 0.0
        %1405 = vmatpush1.msra.mxu0 0.0
        %1406 = vmatprep.subr.mxu0 0.0
        %1407 = vmatpush1.msra.mxu0 0.0
        %1408 = vmatprep.subr.mxu0 0.0
        %1409 = vmatpush1.msra.mxu0 0.0
        %1410 = vmatprep.subr.mxu0 0.0
        %1411 = vmatpush1.msra.mxu0 0.0
        %1412 = vmatprep.subr.mxu0 0.0
        %1413 = vmatpush1.msra.mxu0 0.0
        %1414 = vmatprep.subr.mxu0 0.0
        %1415 = vmatpush1.msra.mxu0 0.0
        %1416 = vmatprep.subr.mxu0 0.0
        %1417 = vmatpush1.msra.mxu0 0.0
        %1418 = vmatprep.subr.mxu0 0.0
        %1419 = vmatpush1.msra.mxu0 0.0
        %1420 = vmatprep.subr.mxu0 0.0
        %1421 = vmatpush1.msra.mxu0 0.0
        %1422 = vmatprep.subr.mxu0 0.0
        %1423 = vmatpush1.msra.mxu0 0.0
        %1424 = vmatprep.subr.mxu0 0.0
        %1425 = vmatpush1.msra.mxu0 0.0
        %1426 = vmatprep.subr.mxu0 0.0
        %1427 = vmatpush1.msra.mxu0 0.0
        %1428 = vmatprep.subr.mxu0 0.0
        %1429 = vmatpush1.msra.mxu0 0.0
        %1430 = vmatprep.subr.mxu0 0.0
        %1431 = vmatpush1.msra.mxu0 0.0
        %1432 = vmatprep.subr.mxu0 0.0
        %1433 = vmatpush1.msra.mxu0 0.0
        %1434 = vmatprep.subr.mxu0 0.0
        %1435 = vmatpush1.msra.mxu0 0.0
        %1436 = vmatprep.subr.mxu0 0.0
        %1437 = vmatpush1.msra.mxu0 0.0
        %1438 = vmatprep.subr.mxu0 0.0
        %1439 = vmatpush1.msra.mxu0 0.0
        %1440 = vmatprep.subr.mxu0 0.0
        %1441 = vmatpush1.msra.mxu0 0.0
        %1442 = vmatprep.subr.mxu0 0.0
        %1443 = vmatpush1.msra.mxu0 0.0
        %1444 = vmatprep.subr.mxu0 0.0
        %1445 = vmatpush1.msra.mxu0 0.0
        %1446 = vmatprep.subr.mxu0 0.0
        %1447 = vmatpush1.msra.mxu0 0.0
        %1448 = vmatprep.subr.mxu0 0.0
        %1449 = vmatpush1.msra.mxu0 0.0
        %1450 = vmatprep.subr.mxu0 0.0
        %1451 = vmatpush1.msra.mxu0 0.0
        %1452 = vmatprep.subr.mxu0 0.0
        %1453 = vmatpush1.msra.mxu0 0.0
        %1454 = vmatprep.subr.mxu0 0.0
        %1455 = vmatpush1.msra.mxu0 0.0
        %1456 = vmatprep.subr.mxu0 0.0
        %1457 = vmatpush1.msra.mxu0 0.0
        %1458 = vmatprep.subr.mxu0 0.0
        %1459 = vmatpush1.msra.mxu0 0.0
        %1460 = vmatprep.subr.mxu0 0.0
        %1461 = vmatpush1.msra.mxu0 0.0
        %1462 = vmatprep.mubr.f32.mxu0 0.0
        %1463 = vmatmul.mubr.f32.gmra.mrb[0].mxu0 %v1396
        %v1464 = vpop.f32.mrb[0].mxu0
        %v1465 = vadd.f32 0.0, %v1464
        %v1466 = vpop.f32.mrb[0].mxu0
        %1467 = vdwg.mxu0
        %v1469 = vsel %vm1046, %v1392, 0
        %1471 = vmatprep.subr.mxu0 0.0
        %1472 = vmatpush1.msra.mxu0 %v1043
        %1473 = vmatprep.subr.mxu0 0.0
        %1474 = vmatpush1.msra.mxu0 0.0
        %1475 = vmatprep.subr.mxu0 0.0
        %1476 = vmatpush1.msra.mxu0 0.0
        %1477 = vmatprep.subr.mxu0 0.0
        %1478 = vmatpush1.msra.mxu0 0.0
        %1479 = vmatprep.subr.mxu0 0.0
        %1480 = vmatpush1.msra.mxu0 0.0
        %1481 = vmatprep.subr.mxu0 0.0
        %1482 = vmatpush1.msra.mxu0 0.0
        %1483 = vmatprep.subr.mxu0 0.0
        %1484 = vmatpush1.msra.mxu0 0.0
        %1485 = vmatprep.subr.mxu0 0.0
        %1486 = vmatpush1.msra.mxu0 0.0
        %1487 = vmatprep.subr.mxu0 0.0
        %1488 = vmatpush1.msra.mxu0 0.0
        %1489 = vmatprep.subr.mxu0 0.0
        %1490 = vmatpush1.msra.mxu0 0.0
        %1491 = vmatprep.subr.mxu0 0.0
        %1492 = vmatpush1.msra.mxu0 0.0
        %1493 = vmatprep.subr.mxu0 0.0
        %1494 = vmatpush1.msra.mxu0 0.0
        %1495 = vmatprep.subr.mxu0 0.0
        %1496 = vmatpush1.msra.mxu0 0.0
        %1497 = vmatprep.subr.mxu0 0.0
        %1498 = vmatpush1.msra.mxu0 0.0
        %1499 = vmatprep.subr.mxu0 0.0
        %1500 = vmatpush1.msra.mxu0 0.0
        %1501 = vmatprep.subr.mxu0 0.0
        %1502 = vmatpush1.msra.mxu0 0.0
        %1503 = vmatprep.subr.mxu0 0.0
        %1504 = vmatpush1.msra.mxu0 0.0
        %1505 = vmatprep.subr.mxu0 0.0
        %1506 = vmatpush1.msra.mxu0 0.0
        %1507 = vmatprep.subr.mxu0 0.0
        %1508 = vmatpush1.msra.mxu0 0.0
        %1509 = vmatprep.subr.mxu0 0.0
        %1510 = vmatpush1.msra.mxu0 0.0
        %1511 = vmatprep.subr.mxu0 0.0
        %1512 = vmatpush1.msra.mxu0 0.0
        %1513 = vmatprep.subr.mxu0 0.0
        %1514 = vmatpush1.msra.mxu0 0.0
        %1515 = vmatprep.subr.mxu0 0.0
        %1516 = vmatpush1.msra.mxu0 0.0
        %1517 = vmatprep.subr.mxu0 0.0
        %1518 = vmatpush1.msra.mxu0 0.0
        %1519 = vmatprep.subr.mxu0 0.0
        %1520 = vmatpush1.msra.mxu0 0.0
        %1521 = vmatprep.subr.mxu0 0.0
        %1522 = vmatpush1.msra.mxu0 0.0
        %1523 = vmatprep.subr.mxu0 0.0
        %1524 = vmatpush1.msra.mxu0 0.0
        %1525 = vmatprep.subr.mxu0 0.0
        %1526 = vmatpush1.msra.mxu0 0.0
        %1527 = vmatprep.subr.mxu0 0.0
        %1528 = vmatpush1.msra.mxu0 0.0
        %1529 = vmatprep.subr.mxu0 0.0
        %1530 = vmatpush1.msra.mxu0 0.0
        %1531 = vmatprep.subr.mxu0 0.0
        %1532 = vmatpush1.msra.mxu0 0.0
        %1533 = vmatprep.subr.mxu0 0.0
        %1534 = vmatpush1.msra.mxu0 0.0
        %1535 = vmatprep.mubr.f32.mxu0 0.0
        %1536 = vmatmul.mubr.f32.gmra.mrb[0].mxu0 %v1469
        %v1537 = vpop.f32.mrb[0].mxu0
        %v1538 = vadd.f32 0.0, %v1537
        %v1539 = vpop.f32.mrb[0].mxu0
        %1540 = vdwg.mxu0
        %v1542 = vsel %vm1046, %v1393, 0
        %1544 = vmatprep.subr.mxu0 0.0
        %1545 = vmatpush1.msra.mxu0 %v1044
        %1546 = vmatprep.subr.mxu0 0.0
        %1547 = vmatpush1.msra.mxu0 0.0
        %1548 = vmatprep.subr.mxu0 0.0
        %1549 = vmatpush1.msra.mxu0 0.0
        %1550 = vmatprep.subr.mxu0 0.0
        %1551 = vmatpush1.msra.mxu0 0.0
        %1552 = vmatprep.subr.mxu0 0.0
        %1553 = vmatpush1.msra.mxu0 0.0
        %1554 = vmatprep.subr.mxu0 0.0
        %1555 = vmatpush1.msra.mxu0 0.0
        %1556 = vmatprep.subr.mxu0 0.0
        %1557 = vmatpush1.msra.mxu0 0.0
        %1558 = vmatprep.subr.mxu0 0.0
        %1559 = vmatpush1.msra.mxu0 0.0
        %1560 = vmatprep.subr.mxu0 0.0
        %1561 = vmatpush1.msra.mxu0 0.0
        %1562 = vmatprep.subr.mxu0 0.0
        %1563 = vmatpush1.msra.mxu0 0.0
        %1564 = vmatprep.subr.mxu0 0.0
        %1565 = vmatpush1.msra.mxu0 0.0
        %1566 = vmatprep.subr.mxu0 0.0
        %1567 = vmatpush1.msra.mxu0 0.0
        %1568 = vmatprep.subr.mxu0 0.0
        %1569 = vmatpush1.msra.mxu0 0.0
        %1570 = vmatprep.subr.mxu0 0.0
        %1571 = vmatpush1.msra.mxu0 0.0
        %1572 = vmatprep.subr.mxu0 0.0
        %1573 = vmatpush1.msra.mxu0 0.0
        %1574 = vmatprep.subr.mxu0 0.0
        %1575 = vmatpush1.msra.mxu0 0.0
        %1576 = vmatprep.subr.mxu0 0.0
        %1577 = vmatpush1.msra.mxu0 0.0
        %1578 = vmatprep.subr.mxu0 0.0
        %1579 = vmatpush1.msra.mxu0 0.0
        %1580 = vmatprep.subr.mxu0 0.0
        %1581 = vmatpush1.msra.mxu0 0.0
        %1582 = vmatprep.subr.mxu0 0.0
        %1583 = vmatpush1.msra.mxu0 0.0
        %1584 = vmatprep.subr.mxu0 0.0
        %1585 = vmatpush1.msra.mxu0 0.0
        %1586 = vmatprep.subr.mxu0 0.0
        %1587 = vmatpush1.msra.mxu0 0.0
        %1588 = vmatprep.subr.mxu0 0.0
        %1589 = vmatpush1.msra.mxu0 0.0
        %1590 = vmatprep.subr.mxu0 0.0
        %1591 = vmatpush1.msra.mxu0 0.0
        %1592 = vmatprep.subr.mxu0 0.0
        %1593 = vmatpush1.msra.mxu0 0.0
        %1594 = vmatprep.subr.mxu0 0.0
        %1595 = vmatpush1.msra.mxu0 0.0
        %1596 = vmatprep.subr.mxu0 0.0
        %1597 = vmatpush1.msra.mxu0 0.0
        %1598 = vmatprep.subr.mxu0 0.0
        %1599 = vmatpush1.msra.mxu0 0.0
        %1600 = vmatprep.subr.mxu0 0.0
        %1601 = vmatpush1.msra.mxu0 0.0
        %1602 = vmatprep.subr.mxu0 0.0
        %1603 = vmatpush1.msra.mxu0 0.0
        %1604 = vmatprep.subr.mxu0 0.0
        %1605 = vmatpush1.msra.mxu0 0.0
        %1606 = vmatprep.subr.mxu0 0.0
        %1607 = vmatpush1.msra.mxu0 0.0
        %1608 = vmatprep.mubr.f32.mxu0 0.0
        %1609 = vmatmul.mubr.f32.gmra.mrb[0].mxu0 %v1542
        %v1610 = vpop.f32.mrb[0].mxu0
        %v1611 = vadd.f32 0.0, %v1610
        %v1612 = vpop.f32.mrb[0].mxu0
        %1613 = vdwg.mxu0
        %v1615 = vsel %vm1046, %v1394, 0
        %1617 = vmatprep.subr.mxu0 0.0
        %1618 = vmatpush1.msra.mxu0 %v1045
        %1619 = vmatprep.subr.mxu0 0.0
        %1620 = vmatpush1.msra.mxu0 0.0
        %1621 = vmatprep.subr.mxu0 0.0
        %1622 = vmatpush1.msra.mxu0 0.0
        %1623 = vmatprep.subr.mxu0 0.0
        %1624 = vmatpush1.msra.mxu0 0.0
        %1625 = vmatprep.subr.mxu0 0.0
        %1626 = vmatpush1.msra.mxu0 0.0
        %1627 = vmatprep.subr.mxu0 0.0
        %1628 = vmatpush1.msra.mxu0 0.0
        %1629 = vmatprep.subr.mxu0 0.0
        %1630 = vmatpush1.msra.mxu0 0.0
        %1631 = vmatprep.subr.mxu0 0.0
        %1632 = vmatpush1.msra.mxu0 0.0
        %1633 = vmatprep.subr.mxu0 0.0
        %1634 = vmatpush1.msra.mxu0 0.0
        %1635 = vmatprep.subr.mxu0 0.0
        %1636 = vmatpush1.msra.mxu0 0.0
        %1637 = vmatprep.subr.mxu0 0.0
        %1638 = vmatpush1.msra.mxu0 0.0
        %1639 = vmatprep.subr.mxu0 0.0
        %1640 = vmatpush1.msra.mxu0 0.0
        %1641 = vmatprep.subr.mxu0 0.0
        %1642 = vmatpush1.msra.mxu0 0.0
        %1643 = vmatprep.subr.mxu0 0.0
        %1644 = vmatpush1.msra.mxu0 0.0
        %1645 = vmatprep.subr.mxu0 0.0
        %1646 = vmatpush1.msra.mxu0 0.0
        %1647 = vmatprep.subr.mxu0 0.0
        %1648 = vmatpush1.msra.mxu0 0.0
        %1649 = vmatprep.subr.mxu0 0.0
        %1650 = vmatpush1.msra.mxu0 0.0
        %1651 = vmatprep.subr.mxu0 0.0
        %1652 = vmatpush1.msra.mxu0 0.0
        %1653 = vmatprep.subr.mxu0 0.0
        %1654 = vmatpush1.msra.mxu0 0.0
        %1655 = vmatprep.subr.mxu0 0.0
        %1656 = vmatpush1.msra.mxu0 0.0
        %1657 = vmatprep.subr.mxu0 0.0
        %1658 = vmatpush1.msra.mxu0 0.0
        %1659 = vmatprep.subr.mxu0 0.0
        %1660 = vmatpush1.msra.mxu0 0.0
        %1661 = vmatprep.subr.mxu0 0.0
        %1662 = vmatpush1.msra.mxu0 0.0
        %1663 = vmatprep.subr.mxu0 0.0
        %1664 = vmatpush1.msra.mxu0 0.0
        %1665 = vmatprep.subr.mxu0 0.0
        %1666 = vmatpush1.msra.mxu0 0.0
        %1667 = vmatprep.subr.mxu0 0.0
        %1668 = vmatpush1.msra.mxu0 0.0
        %1669 = vmatprep.subr.mxu0 0.0
        %1670 = vmatpush1.msra.mxu0 0.0
        %1671 = vmatprep.subr.mxu0 0.0
        %1672 = vmatpush1.msra.mxu0 0.0
        %1673 = vmatprep.subr.mxu0 0.0
        %1674 = vmatpush1.msra.mxu0 0.0
        %1675 = vmatprep.subr.mxu0 0.0
        %1676 = vmatpush1.msra.mxu0 0.0
        %1677 = vmatprep.subr.mxu0 0.0
        %1678 = vmatpush1.msra.mxu0 0.0
        %1679 = vmatprep.subr.mxu0 0.0
        %1680 = vmatpush1.msra.mxu0 0.0
        %1681 = vmatprep.mubr.f32.mxu0 0.0
        %1682 = vmatmul.mubr.f32.gmra.mrb[0].mxu0 %v1615
        %v1683 = vpop.f32.mrb[0].mxu0
        %v1684 = vadd.f32 0.0, %v1683
        %v1685 = vpop.f32.mrb[0].mxu0
        %1686 = vdwg.mxu0
        %v1687 = vcombine.low %v1465, %v1611
        %v1688 = vcombine.high %v1465, %v1611
        %v1690 = vunpack.c.l.s4 1983009808
        %v1691 = vunpack.c.0.s8 %v1690
        %v1692 = vlaneseq
        %v1693 = vshrl.u32 %v1692, 7
        %v1694 = vsub.s32 %v1691, %v1693
        %v1695 = vrot.slane %v1687, %v1694
        %v1697 = vunpack.c.l.s4 1983009808
        %v1698 = vunpack.c.0.s8 %v1697
        %v1699 = vlaneseq
        %v1700 = vshrl.u32 %v1699, 7
        %v1701 = vsub.s32 %v1698, %v1700
        %v1702 = vrot.slane %v1688, %v1701
        %v1703 = vcombine.low %v1538, %v1684
        %v1704 = vcombine.high %v1538, %v1684
        %v1706 = vunpack.c.l.s4 1983009808
        %v1707 = vunpack.c.0.s8 %v1706
        %v1708 = vlaneseq
        %v1709 = vshrl.u32 %v1708, 7
        %v1710 = vsub.s32 %v1707, %v1709
        %v1711 = vrot.slane %v1703, %v1710
        %v1713 = vunpack.c.l.s4 1983009808
        %v1714 = vunpack.c.0.s8 %v1713
        %v1715 = vlaneseq
        %v1716 = vshrl.u32 %v1715, 7
        %v1717 = vsub.s32 %v1714, %v1716
        %v1718 = vrot.slane %v1704, %v1717
        %v1719 = vcombine.low %v1695, %v1711
        %v1720 = vcombine.high %v1695, %v1711
        %v1722 = vunpack.c.l.s4 1934713408
        %v1723 = vunpack.c.0.s8 %v1722
        %v1724 = vlaneseq
        %v1725 = vshrl.u32 %v1724, 7
        %v1726 = vsub.s32 %v1723, %v1725
        %v1727 = vrot.slane %v1719, %v1726
        %v1729 = vunpack.c.l.s4 1934713408
        %v1730 = vunpack.c.0.s8 %v1729
        %v1731 = vlaneseq
        %v1732 = vshrl.u32 %v1731, 7
        %v1733 = vsub.s32 %v1730, %v1732
        %v1734 = vrot.slane %v1720, %v1733
        %v1735 = vcombine.low %v1702, %v1718
        %v1736 = vcombine.high %v1702, %v1718
        %v1738 = vunpack.c.l.s4 1934713408
        %v1739 = vunpack.c.0.s8 %v1738
        %v1740 = vlaneseq
        %v1741 = vshrl.u32 %v1740, 7
        %v1742 = vsub.s32 %v1739, %v1741
        %v1743 = vrot.slane %v1735, %v1742
        %v1745 = vunpack.c.l.s4 1934713408
        %v1746 = vunpack.c.0.s8 %v1745
        %v1747 = vlaneseq
        %v1748 = vshrl.u32 %v1747, 7
        %v1749 = vsub.s32 %v1746, %v1748
        %v1750 = vrot.slane %v1736, %v1749
        %v1751 = vcombine.high %v1727, 0.0
        %v1752 = vcombine.high %v1734, 0.0
        %v1753 = vcombine.high %v1743, 0.0
        %v1754 = vcombine.high %v1750, 0.0
        %v1755 = vcombine.low %v1727, %v1734
        %v1757 = vunpack.c.l.s4 1983009808
        %v1758 = vunpack.c.0.s8 %v1757
        %v1759 = vlaneseq
        %v1760 = vshrl.u32 %v1759, 7
        %v1761 = vsub.s32 %v1758, %v1760
        %v1762 = vrot.slane %v1755, %v1761
        %v1763 = vcombine.low %v1751, %v1752
        %v1765 = vunpack.c.l.s4 1983009808
        %v1766 = vunpack.c.0.s8 %v1765
        %v1767 = vlaneseq
        %v1768 = vshrl.u32 %v1767, 7
        %v1769 = vsub.s32 %v1766, %v1768
        %v1770 = vrot.slane %v1763, %v1769
        %v1771 = vcombine.low %v1743, %v1750
        %v1773 = vunpack.c.l.s4 1983009808
        %v1774 = vunpack.c.0.s8 %v1773
        %v1775 = vlaneseq
        %v1776 = vshrl.u32 %v1775, 7
        %v1777 = vsub.s32 %v1774, %v1776
        %v1778 = vrot.slane %v1771, %v1777
        %v1779 = vcombine.low %v1753, %v1754
        %v1781 = vunpack.c.l.s4 1983009808
        %v1782 = vunpack.c.0.s8 %v1781
        %v1783 = vlaneseq
        %v1784 = vshrl.u32 %v1783, 7
        %v1785 = vsub.s32 %v1782, %v1784
        %v1786 = vrot.slane %v1779, %v1785
        %v1787 = vcombine.low %v1762, %v1770
        %v1788 = vcombine.high %v1762, %v1770
        %v1790 = vunpack.c.l.s4 1934713408
        %v1791 = vunpack.c.0.s8 %v1790
        %v1792 = vlaneseq
        %v1793 = vshrl.u32 %v1792, 7
        %v1794 = vsub.s32 %v1791, %v1793
        %v1795 = vrot.slane %v1787, %v1794
        %v1797 = vunpack.c.l.s4 1934713408
        %v1798 = vunpack.c.0.s8 %v1797
        %v1799 = vlaneseq
        %v1800 = vshrl.u32 %v1799, 7
        %v1801 = vsub.s32 %v1798, %v1800
        %v1802 = vrot.slane %v1788, %v1801
        %v1803 = vcombine.low %v1778, %v1786
        %v1804 = vcombine.high %v1778, %v1786
        %v1806 = vunpack.c.l.s4 1934713408
        %v1807 = vunpack.c.0.s8 %v1806
        %v1808 = vlaneseq
        %v1809 = vshrl.u32 %v1808, 7
        %v1810 = vsub.s32 %v1807, %v1809
        %v1811 = vrot.slane %v1803, %v1810
        %v1813 = vunpack.c.l.s4 1934713408
        %v1814 = vunpack.c.0.s8 %v1813
        %v1815 = vlaneseq
        %v1816 = vshrl.u32 %v1815, 7
        %v1817 = vsub.s32 %v1814, %v1816
        %v1818 = vrot.slane %v1804, %v1817
        %v1819 = vcombine.low %v1795, %v1811
        %v1820 = vcombine.high %v1795, %v1811
        %v1821 = vcombine.low %v1802, %v1818
        %v1822 = vcombine.high %v1802, %v1818
        %1824 = vrot.lane.b32.xlu0 %v1820, 8
        %v1825 = vpop.permute.xlu0 %1824
        %1828 = vrot.lane.b32.xlu0 %v1821, 16
        %v1829 = vpop.permute.xlu0 %1828
        %1832 = vrot.lane.b32.xlu0 %v1822, 24
        %v1833 = vpop.permute.xlu0 %1832
        %v1835 = vsel %vm1046, %v1819, %v1825
        %vm1836 = vcmask 130048
        %v1837 = vsel %vm1836, %v1835, %v1829
        %vm1838 = vcmask 195584
        %v1839 = vsel %vm1838, %v1837, %v1833
        %v1840 = vld [vmem:[%s6] sm:$0xff]
        %v1841 = vld [vmem:[%s6 + $0x8] sm:$0xff]
        %v1842 = vld [vmem:[%s6 + $0x10] sm:$0xff]
        %v1843 = vld [vmem:[%s6 + $0x18] sm:$0xff]
        %v1844 = vld [vmem:[%s7] sm:$0x1]
        %v1846 = vlaneseq
        %v1847 = vshrl.u32 %v1846, 7
        %v1848 = vsub.s32 0, %v1847
        %v1849 = vrot.slane %v1844, %v1848
        %v1852 = vsel %vm484, %v1839, 0
        %1854 = vmatprep.subr.mxu0 0.0
        %1855 = vmatpush1.msra.mxu0 %v1840
        %1856 = vmatprep.subr.mxu0 0.0
        %1857 = vmatpush1.msra.mxu0 %v1841
        %1858 = vmatprep.subr.mxu0 0.0
        %1859 = vmatpush1.msra.mxu0 %v1842
        %1860 = vmatprep.subr.mxu0 0.0
        %1861 = vmatpush1.msra.mxu0 %v1843
        %1862 = vmatprep.subr.mxu0 0.0
        %1863 = vmatpush1.msra.mxu0 0.0
        %1864 = vmatprep.subr.mxu0 0.0
        %1865 = vmatpush1.msra.mxu0 0.0
        %1866 = vmatprep.subr.mxu0 0.0
        %1867 = vmatpush1.msra.mxu0 0.0
        %1868 = vmatprep.subr.mxu0 0.0
        %1869 = vmatpush1.msra.mxu0 0.0
        %1870 = vmatprep.subr.mxu0 0.0
        %1871 = vmatpush1.msra.mxu0 0.0
        %1872 = vmatprep.subr.mxu0 0.0
        %1873 = vmatpush1.msra.mxu0 0.0
        %1874 = vmatprep.subr.mxu0 0.0
        %1875 = vmatpush1.msra.mxu0 0.0
        %1876 = vmatprep.subr.mxu0 0.0
        %1877 = vmatpush1.msra.mxu0 0.0
        %1878 = vmatprep.subr.mxu0 0.0
        %1879 = vmatpush1.msra.mxu0 0.0
        %1880 = vmatprep.subr.mxu0 0.0
        %1881 = vmatpush1.msra.mxu0 0.0
        %1882 = vmatprep.subr.mxu0 0.0
        %1883 = vmatpush1.msra.mxu0 0.0
        %1884 = vmatprep.subr.mxu0 0.0
        %1885 = vmatpush1.msra.mxu0 0.0
        %1886 = vmatprep.subr.mxu0 0.0
        %1887 = vmatpush1.msra.mxu0 0.0
        %1888 = vmatprep.subr.mxu0 0.0
        %1889 = vmatpush1.msra.mxu0 0.0
        %1890 = vmatprep.subr.mxu0 0.0
        %1891 = vmatpush1.msra.mxu0 0.0
        %1892 = vmatprep.subr.mxu0 0.0
        %1893 = vmatpush1.msra.mxu0 0.0
        %1894 = vmatprep.subr.mxu0 0.0
        %1895 = vmatpush1.msra.mxu0 0.0
        %1896 = vmatprep.subr.mxu0 0.0
        %1897 = vmatpush1.msra.mxu0 0.0
        %1898 = vmatprep.subr.mxu0 0.0
        %1899 = vmatpush1.msra.mxu0 0.0
        %1900 = vmatprep.subr.mxu0 0.0
        %1901 = vmatpush1.msra.mxu0 0.0
        %1902 = vmatprep.subr.mxu0 0.0
        %1903 = vmatpush1.msra.mxu0 0.0
        %1904 = vmatprep.subr.mxu0 0.0
        %1905 = vmatpush1.msra.mxu0 0.0
        %1906 = vmatprep.subr.mxu0 0.0
        %1907 = vmatpush1.msra.mxu0 0.0
        %1908 = vmatprep.subr.mxu0 0.0
        %1909 = vmatpush1.msra.mxu0 0.0
        %1910 = vmatprep.subr.mxu0 0.0
        %1911 = vmatpush1.msra.mxu0 0.0
        %1912 = vmatprep.subr.mxu0 0.0
        %1913 = vmatpush1.msra.mxu0 0.0
        %1914 = vmatprep.subr.mxu0 0.0
        %1915 = vmatpush1.msra.mxu0 0.0
        %1916 = vmatprep.subr.mxu0 0.0
        %1917 = vmatpush1.msra.mxu0 0.0
        %1918 = vmatprep.mubr.f32.mxu0 0.0
        %1919 = vmatmul.mubr.f32.gmra.mrb[0].mxu0 %v1852
        %v1920 = vpop.f32.mrb[0].mxu0
        %v1921 = vadd.f32 %v1849, %v1920
        %v1922 = vpop.f32.mrb[0].mxu0
        %1923 = vdwg.mxu0
        %v1924 = vadd.f32 %v480, %v1921
        %v1925 = vld [vmem:[%s8] sm:$0x1]
        %v1926 = vld [vmem:[%s9] sm:$0x1]
        %v1927 = vsel %vm484, %v1924, 0.0
        %1928 = vadd.xlane.f32.xlu0 %v1927
        %v1929 = vpop.xlane.xlu0 %1928
        %v1930 = vmul.f32 %v1929, %v488
        %v1931 = vsub.f32 %v1924, %v1930
        %v1932 = vmul.f32 %v1931, %v1931
        %v1933 = vsel %vm484, %v1932, 0.0
        %1934 = vadd.xlane.f32.xlu0 %v1933
        %v1935 = vpop.xlane.xlu0 %1934
        %v1936 = vmul.f32 %v1935, 0.032258064
        %v1937 = vrsqrt.pop %v1936
        %v1938 = vmul.f32 %v1936, %v1937
        %vm1939 = vcmp.eq.f32.partialorder %v1936, inf
        %v1940 = vsel %vm1939, %v1936, %v1938
        %vm1941 = vcmp.eq.f32.partialorder %v1936, 0.0
        %v1942 = vand.u32 %v1936, 2147483648
        %v1943 = vsel %vm1941, %v1942, %v1940
        %v1944 = vadd.f32 %v1943, 1e-06
        %v1945 = vrcp.pop %v1944
        %v1947 = vlaneseq
        %v1948 = vshrl.u32 %v1947, 7
        %v1949 = vsub.s32 0, %v1948
        %v1950 = vrot.slane %v1925, %v1949
        %v1952 = vmul.f32 %v1950, %v1945
        %v1953 = vmul.f32 %v1931, %v1952
        %v1955 = vlaneseq
        %v1956 = vshrl.u32 %v1955, 7
        %v1957 = vsub.s32 0, %v1956
        %v1958 = vrot.slane %v1926, %v1957
        %v1960 = vadd.f32 %v1953, %v1958
        %v1961 = vld [vmem:[%s10] sm:$0xff]
        %v1962 = vld [vmem:[%s10 + $0x8] sm:$0xff]
        %v1963 = vld [vmem:[%s10 + $0x10] sm:$0xff]
        %v1964 = vld [vmem:[%s10 + $0x18] sm:$0xff]
        %v1965 = vld [vmem:[%s11] sm:$0x1]
        %v1967 = vlaneseq
        %v1968 = vshrl.u32 %v1967, 7
        %v1969 = vsub.s32 0, %v1968
        %v1970 = vrot.slane %v1965, %v1969
        %v1973 = vsel %vm484, %v1960, 0
        %1975 = vmatprep.subr.mxu0 0.0
        %1976 = vmatpush1.msra.mxu0 %v1961
        %1977 = vmatprep.subr.mxu0 0.0
        %1978 = vmatpush1.msra.mxu0 %v1962
        %1979 = vmatprep.subr.mxu0 0.0
        %1980 = vmatpush1.msra.mxu0 %v1963
        %1981 = vmatprep.subr.mxu0 0.0
        %1982 = vmatpush1.msra.mxu0 %v1964
        %1983 = vmatprep.subr.mxu0 0.0
        %1984 = vmatpush1.msra.mxu0 0.0
        %1985 = vmatprep.subr.mxu0 0.0
        %1986 = vmatpush1.msra.mxu0 0.0
        %1987 = vmatprep.subr.mxu0 0.0
        %1988 = vmatpush1.msra.mxu0 0.0
        %1989 = vmatprep.subr.mxu0 0.0
        %1990 = vmatpush1.msra.mxu0 0.0
        %1991 = vmatprep.subr.mxu0 0.0
        %1992 = vmatpush1.msra.mxu0 0.0
        %1993 = vmatprep.subr.mxu0 0.0
        %1994 = vmatpush1.msra.mxu0 0.0
        %1995 = vmatprep.subr.mxu0 0.0
        %1996 = vmatpush1.msra.mxu0 0.0
        %1997 = vmatprep.subr.mxu0 0.0
        %1998 = vmatpush1.msra.mxu0 0.0
        %1999 = vmatprep.subr.mxu0 0.0
        %2000 = vmatpush1.msra.mxu0 0.0
        %2001 = vmatprep.subr.mxu0 0.0
        %2002 = vmatpush1.msra.mxu0 0.0
        %2003 = vmatprep.subr.mxu0 0.0
        %2004 = vmatpush1.msra.mxu0 0.0
        %2005 = vmatprep.subr.mxu0 0.0
        %2006 = vmatpush1.msra.mxu0 0.0
        %2007 = vmatprep.subr.mxu0 0.0
        %2008 = vmatpush1.msra.mxu0 0.0
        %2009 = vmatprep.subr.mxu0 0.0
        %2010 = vmatpush1.msra.mxu0 0.0
        %2011 = vmatprep.subr.mxu0 0.0
        %2012 = vmatpush1.msra.mxu0 0.0
        %2013 = vmatprep.subr.mxu0 0.0
        %2014 = vmatpush1.msra.mxu0 0.0
        %2015 = vmatprep.subr.mxu0 0.0
        %2016 = vmatpush1.msra.mxu0 0.0
        %2017 = vmatprep.subr.mxu0 0.0
        %2018 = vmatpush1.msra.mxu0 0.0
        %2019 = vmatprep.subr.mxu0 0.0
        %2020 = vmatpush1.msra.mxu0 0.0
        %2021 = vmatprep.subr.mxu0 0.0
        %2022 = vmatpush1.msra.mxu0 0.0
        %2023 = vmatprep.subr.mxu0 0.0
        %2024 = vmatpush1.msra.mxu0 0.0
        %2025 = vmatprep.subr.mxu0 0.0
        %2026 = vmatpush1.msra.mxu0 0.0
        %2027 = vmatprep.subr.mxu0 0.0
        %2028 = vmatpush1.msra.mxu0 0.0
        %2029 = vmatprep.subr.mxu0 0.0
        %2030 = vmatpush1.msra.mxu0 0.0
        %2031 = vmatprep.subr.mxu0 0.0
        %2032 = vmatpush1.msra.mxu0 0.0
        %2033 = vmatprep.subr.mxu0 0.0
        %2034 = vmatpush1.msra.mxu0 0.0
        %2035 = vmatprep.subr.mxu0 0.0
        %2036 = vmatpush1.msra.mxu0 0.0
        %2037 = vmatprep.subr.mxu0 0.0
        %2038 = vmatpush1.msra.mxu0 0.0
        %2039 = vmatprep.mubr.f32.mxu0 0.0
        %2040 = vmatmul.mubr.f32.gmra.mrb[0].mxu0 %v1973
        %v2041 = vpop.f32.mrb[0].mxu0
        %v2042 = vadd.f32 %v1970, %v2041
        %v2043 = vpop.f32.mrb[0].mxu0
        %2044 = vdwg.mxu0
        %v2045 = vmax.f32 %v2042, 0.0
        %v2046 = vld [vmem:[%s12] sm:$0xff]
        %v2047 = vld [vmem:[%s12 + $0x8] sm:$0xff]
        %v2048 = vld [vmem:[%s12 + $0x10] sm:$0xff]
        %v2049 = vld [vmem:[%s12 + $0x18] sm:$0xff]
        %v2050 = vld [vmem:[%s12 + $0x20] sm:$0xff]
        %v2051 = vld [vmem:[%s12 + $0x28] sm:$0xff]
        %v2052 = vld [vmem:[%s12 + $0x30] sm:$0xff]
        %v2053 = vld [vmem:[%s12 + $0x38] sm:$0xff]
        %v2054 = vld [vmem:[%s12 + $0x40] sm:$0xff]
        %v2055 = vld [vmem:[%s12 + $0x48] sm:$0xff]
        %v2056 = vld [vmem:[%s12 + $0x50] sm:$0xff]
        %v2057 = vld [vmem:[%s12 + $0x58] sm:$0xff]
        %v2058 = vld [vmem:[%s12 + $0x60] sm:$0xff]
        %v2059 = vld [vmem:[%s12 + $0x68] sm:$0xff]
        %v2060 = vld [vmem:[%s12 + $0x70] sm:$0xff]
        %v2061 = vld [vmem:[%s12 + $0x78] sm:$0xff]
        %v2062 = vld [vmem:[%s13] sm:$0x1]
        %v2064 = vlaneseq
        %v2065 = vshrl.u32 %v2064, 7
        %v2066 = vsub.s32 0, %v2065
        %v2067 = vrot.slane %v2062, %v2066
        %2069 = vmatprep.subr.mxu0 0.0
        %2070 = vmatpush1.msra.mxu0 %v2046
        %2071 = vmatprep.subr.mxu0 0.0
        %2072 = vmatpush1.msra.mxu0 %v2047
        %2073 = vmatprep.subr.mxu0 0.0
        %2074 = vmatpush1.msra.mxu0 %v2048
        %2075 = vmatprep.subr.mxu0 0.0
        %2076 = vmatpush1.msra.mxu0 %v2049
        %2077 = vmatprep.subr.mxu0 0.0
        %2078 = vmatpush1.msra.mxu0 %v2050
        %2079 = vmatprep.subr.mxu0 0.0
        %2080 = vmatpush1.msra.mxu0 %v2051
        %2081 = vmatprep.subr.mxu0 0.0
        %2082 = vmatpush1.msra.mxu0 %v2052
        %2083 = vmatprep.subr.mxu0 0.0
        %2084 = vmatpush1.msra.mxu0 %v2053
        %2085 = vmatprep.subr.mxu0 0.0
        %2086 = vmatpush1.msra.mxu0 %v2054
        %2087 = vmatprep.subr.mxu0 0.0
        %2088 = vmatpush1.msra.mxu0 %v2055
        %2089 = vmatprep.subr.mxu0 0.0
        %2090 = vmatpush1.msra.mxu0 %v2056
        %2091 = vmatprep.subr.mxu0 0.0
        %2092 = vmatpush1.msra.mxu0 %v2057
        %2093 = vmatprep.subr.mxu0 0.0
        %2094 = vmatpush1.msra.mxu0 %v2058
        %2095 = vmatprep.subr.mxu0 0.0
        %2096 = vmatpush1.msra.mxu0 %v2059
        %2097 = vmatprep.subr.mxu0 0.0
        %2098 = vmatpush1.msra.mxu0 %v2060
        %2099 = vmatprep.subr.mxu0 0.0
        %2100 = vmatpush1.msra.mxu0 %v2061
        %2101 = vmatprep.subr.mxu0 0.0
        %2102 = vmatpush1.msra.mxu0 0.0
        %2103 = vmatprep.subr.mxu0 0.0
        %2104 = vmatpush1.msra.mxu0 0.0
        %2105 = vmatprep.subr.mxu0 0.0
        %2106 = vmatpush1.msra.mxu0 0.0
        %2107 = vmatprep.subr.mxu0 0.0
        %2108 = vmatpush1.msra.mxu0 0.0
        %2109 = vmatprep.subr.mxu0 0.0
        %2110 = vmatpush1.msra.mxu0 0.0
        %2111 = vmatprep.subr.mxu0 0.0
        %2112 = vmatpush1.msra.mxu0 0.0
        %2113 = vmatprep.subr.mxu0 0.0
        %2114 = vmatpush1.msra.mxu0 0.0
        %2115 = vmatprep.subr.mxu0 0.0
        %2116 = vmatpush1.msra.mxu0 0.0
        %2117 = vmatprep.subr.mxu0 0.0
        %2118 = vmatpush1.msra.mxu0 0.0
        %2119 = vmatprep.subr.mxu0 0.0
        %2120 = vmatpush1.msra.mxu0 0.0
        %2121 = vmatprep.subr.mxu0 0.0
        %2122 = vmatpush1.msra.mxu0 0.0
        %2123 = vmatprep.subr.mxu0 0.0
        %2124 = vmatpush1.msra.mxu0 0.0
        %2125 = vmatprep.subr.mxu0 0.0
        %2126 = vmatpush1.msra.mxu0 0.0
        %2127 = vmatprep.subr.mxu0 0.0
        %2128 = vmatpush1.msra.mxu0 0.0
        %2129 = vmatprep.subr.mxu0 0.0
        %2130 = vmatpush1.msra.mxu0 0.0
        %2131 = vmatprep.subr.mxu0 0.0
        %2132 = vmatpush1.msra.mxu0 0.0
        %2133 = vmatprep.mubr.f32.mxu0 0.0
        %2134 = vmatmul.mubr.f32.gmra.mrb[0].mxu0 %v2045
        %v2135 = vpop.f32.mrb[0].mxu0
        %v2136 = vadd.f32 %v2067, %v2135
        %v2137 = vpop.f32.mrb[0].mxu0
        %2138 = vdwg.mxu0
        %v2139 = vadd.f32 %v1924, %v2136
        %2140 = vst.msk [vmem:[%s471] sm:$0xff] %vm484, %v2139
        %s2141 = sand.u32 %s340, 1
        %s2142 = scalar_lea.sflag [#allocation3], %s2141
        %s2143 = sand.u32 %s340, 1
        %s2144 = smul.addr %s2143, 8
        %s2145 = scalar_lea.vmem [#allocation2], %s2144
        // Predicated region
        $region77: #{encoder_block.1} parent=75 // pred_check
          %p2146 = pneg %p350
        $region78: #{encoder_block.1} parent=75 // pred_check_branch
          %2148 = sbr.rel (%p2146) target = $region80
        $region79: #{encoder_block.1} parent=75 // pred_region
          %s2150 = ssub.s32 128, 128
          %2151 = vsyncadd %s2142, %s2150
          %s2152 = smul.addr %s28, 128
          %s2153 = scalar_lea.hbm %s14, %s2152
          %s2155 = sshll.u32 %s2145, 4
          %s2156 = int_to_ptr.vmem [resolvable:$true] %s2155
          %2158 = dma.vmem_to_hbm [thread:$0]  %s2156, 128, %s2153, %s2142
        $region80: #{encoder_block.1} parent=75 // pred_fallthru
          _
      $region76: #{encoder_block.1} parent=5 // pred_fallthru
        _
      %p2159 = scmp.le.s32.totalorder 2, %s23
      // Predicated region
      $region81: #{encoder_block.1} parent=5 // pred_check
        %p2160 = pneg %p2159
      $region82: #{encoder_block.1} parent=5 // pred_check_branch
        %2162 = sbr.rel (%p2160) target = $region84
      $region83: #{encoder_block.1} parent=5 // pred_region
        %s2163 = ssub.s32 %s23, 2
        // Predicated region
        $region85: #{encoder_block.1} parent=83 // pred_check
          %p2164 = pneg %p356
        $region86: #{encoder_block.1} parent=83 // pred_check_branch
          %2166 = sbr.rel (%p2164) target = $region88
        $region87: #{encoder_block.1} parent=83 // pred_region
          %s2167 = sand.u32 %s341, 1
          %s2168 = scalar_lea.sflag [#allocation3], %s2167
          %s2169 = sand.u32 %s341, 1
          %s2170 = smul.addr %s2169, 8
          %s2171 = scalar_lea.vmem [#allocation2], %s2170
          %2172 = dma.done %s2168, 128
        $region88: #{encoder_block.1} parent=83 // pred_fallthru
          _
      $region84: #{encoder_block.1} parent=5 // pred_fallthru
        _
    $region6: #{encoder_block.1} parent=1 // loop_footer
      %s27 = sadd.s32 1, %s23
    $region7: #{encoder_block.1} parent=1 // loop_footer_branch
      %22 = sbr.rel target = $region3
    $region8: #{encoder_block.1} parent=1 // loop_exit
      _
    %2173 = vsyncpa [#allocation3], 1
    %s2174 = scalar_lea.sflag [#allocation3], 1
    %2175 = vsyncpa %s2174, 1

</llo_original>
